<compile_context>
chip_gen: v6e
topology: v6e:2x2x1
jax: 0.10.0
libtpu: 0.0.40
codegen_flags: <defaults>
</compile_context>

<pallas_src>
import numpy as np
import jax
import jax.numpy as jnp
from jax.experimental import pallas as pl
from jax.experimental.pallas import tpu as pltpu

# ---- deterministic parameters (baked as compile-time constants) -------------
_SOBEL_X = np.array([[-1., 0., 1.],
                     [-2., 0., 2.],
                     [-1., 0., 1.]], dtype=np.float32)
_SOBEL_Y = np.array([[-1., -2., -1.],
                     [ 0.,  0.,  0.],
                     [ 1.,  2.,  1.]], dtype=np.float32)
_THETA = (np.arange(8, dtype=np.float64) * 2 + 1) * np.pi / 8
_COS = np.cos(_THETA).astype(np.float32)
_SIN = np.sin(_THETA).astype(np.float32)

_OFF = 3        # image offset in the canvas: 1 (Sobel) + 2 (4x4 accumulation)
_TRO_DEFAULT = 32  # output rows per row tile (multiple of 8)


def _round_up(x: int, m: int) -> int:
    return ((x + m - 1) // m) * m


def _make_siftnet_kernel(M: int, N: int, TRo: int, LC: int, Lo: int,
                         zero_fringe: bool):
    RGt = TRo + 3          # gradient/histogram rows needed per tile
    LG = LC - 2            # gradient/histogram lane width
    W = min(Lo, LC - 5)    # valid lane width of the stored result (>= N+1)
    COS = [float(c) for c in _COS]
    SIN = [float(s) for s in _SIN]

    def kernel(main_ref, halo_ref, out_ref):
        # main_ref : (TRo, LC) canvas rows [t*TRo, t*TRo+TRo)
        # halo_ref : (8,  LC) canvas rows [t*TRo+TRo, t*TRo+TRo+8)
        # out_ref  : (8, TRo, Lo) accumulated histograms for output rows
        #            [t*TRo, (t+1)*TRo); fringe beyond (M+1, N+1) is junk
        #            unless zero_fringe.
        r0 = pl.program_id(1) * TRo
        cvt = jnp.concatenate([main_ref[...], halo_ref[...]], axis=0)  # (TRo+8, LC)

        # --- ImageGradientsLayer: separable 3x3 Sobel ------------------------
        cvl = cvt[:, 0:LG]
        cvc = cvt[:, 1:LG + 1]
        cvr = cvt[:, 2:LG + 2]
        dcol = cvr - cvl                       # [-1, 0, 1] lane pass
        scol = cvl + 2.0 * cvc + cvr           # [ 1, 2, 1] lane pass
        gx = dcol[0:RGt, :] + 2.0 * dcol[1:RGt + 1, :] + dcol[2:RGt + 2, :]
        gy = scol[2:RGt + 2, :] - scol[0:RGt, :]           # (RGt, LG)

        # gradient magnitude, zeroed outside the true image support
        rows_g = jax.lax.broadcasted_iota(jnp.int32, (RGt, LG), 0) + r0
        cols_g = jax.lax.broadcasted_iota(jnp.int32, (RGt, LG), 1)
        in_img = ((rows_g >= 2) & (rows_g <= M + 1) &
                  (cols_g >= 2) & (cols_g <= N + 1))
        mag = jnp.where(in_img, jnp.sqrt(gx * gx + gy * gy), 0.0)

        # --- SIFTOrientationLayer: keep all 8 orientation planes live --------
        # (tie test below compares the exact values that built the max)
        ci = [COS[i] * gx + SIN[i] * gy for i in range(8)]
        mx = jnp.maximum(
            jnp.maximum(jnp.maximum(ci[0], ci[1]), jnp.maximum(ci[2], ci[3])),
            jnp.maximum(jnp.maximum(ci[4], ci[5]), jnp.maximum(ci[6], ci[7])))

        if zero_fringe:
            out_ref[...] = jnp.zeros((8, TRo, Lo), jnp.float32)
            rows_o = jax.lax.broadcasted_iota(jnp.int32, (TRo, W), 0) + r0
            cols_o = jax.lax.broadcasted_iota(jnp.int32, (TRo, W), 1)
            keep = (rows_o <= M) & (cols_o <= N)

        # --- HistogramLayer + SubGridAccumulation (separable 4x4 ones) -------
        for i in range(8):
            h = jnp.where(ci[i] == mx, mag, 0.0)            # (RGt, LG)
            # row (sublane) 4-tap sum via pairwise doubling
            t1 = h[0:RGt - 1, :] + h[1:RGt, :]              # (TRo+2, LG)
            racc = t1[0:TRo, :] + t1[2:TRo + 2, :]          # (TRo,   LG)
            # column (lane) 4-tap sum via pairwise doubling
            u = racc[:, 0:LG - 1] + racc[:, 1:LG]           # (TRo, LG-1)
            ov = u[:, 0:W] + u[:, 2:W + 2]                  # (TRo, W)
            if zero_fringe:
                ov = jnp.where(keep, ov, 0.0)
            # per-channel store; full-width (dense vst) when W == Lo, at most
            # 5 masked lanes in the last vreg otherwise.
            out_ref[i, :, 0:W] = ov

    return kernel


def siftnet_forward(x: jax.Array, *, tile_rows: int = _TRO_DEFAULT,
                    return_padded: bool = False) -> jax.Array:
    """x: (B, 1, M, N) float32 (NCHW).

    Returns (B, 8, M+1, N+1) float32, or -- if return_padded -- the raw
    (B, 8, Rpad, Lo) kernel output with the fringe zeroed (valid window is
    [:, :, :M+1, :N+1]); the latter avoids the output-slice HBM round trip.
    """
    assert x.ndim == 4 and x.shape[1] == 1, "expected NCHW input with C=1"
    B, _, M, N = (int(s) for s in x.shape)

    TRo = min(_round_up(max(int(tile_rows), 8), 8), _round_up(M + 1, 8))
    T = -(-(M + 1) // TRo)            # row tiles
    Rpad = T * TRo                    # stored output rows (multiple of TRo)
    Lo = _round_up(N + 1, 128)        # stored output lanes (lane dense)
    RC = Rpad + 8                     # canvas rows (main tiles + 8-row halo)
    LC = _round_up(N + 6, 128)        # canvas lanes (tight: 3-col halo each side)
    HB = TRo // 8                     # halo block stride in 8-row blocks

    img = x[:, 0].astype(jnp.float32)
    canvas = jnp.pad(img, ((0, 0), (_OFF, RC - M - _OFF), (_OFF, LC - N - _OFF)))
    # TODO(synk): feed `x` unpadded and build the halo in-kernel to remove this
    # input HBM round trip when fusing SIFTNet into a larger pipeline.

    kernel = _make_siftnet_kernel(M, N, TRo, LC, Lo, zero_fringe=return_padded)
    out = pl.pallas_call(
        kernel,
        out_shape=jax.ShapeDtypeStruct((B, 8, Rpad, Lo), jnp.float32),
        grid=(B, T),
        in_specs=[
            # main row tile: canvas rows [t*TRo, (t+1)*TRo)
            pl.BlockSpec((None, TRo, LC), lambda b, t: (b, t, 0)),
            # 8-row halo just below the main tile (overlap via a 2nd spec)
            pl.BlockSpec((None, 8, LC), lambda b, t: (b, (t + 1) * HB, 0)),
        ],
        out_specs=pl.BlockSpec((None, 8, TRo, Lo), lambda b, t: (b, 0, t, 0)),
        compiler_params=pltpu.CompilerParams(
            dimension_semantics=("parallel", "parallel"),
            vmem_limit_bytes=48 * 1024 * 1024),
    )(canvas, canvas)

    if return_padded:
        return out
    # TODO(synk): this slice re-reads/re-writes the output in HBM; use
    # return_padded=True (fringe zeroed in-kernel) if the consumer can take the
    # padded layout, or rely on XLA fusing the slice downstream.
    return out[:, :, :M + 1, :N + 1]


def _siftnet_reference(x_np: np.ndarray) -> np.ndarray:
    """Pure-numpy reference mirroring the PyTorch forward semantics."""
    B, _, M, N = x_np.shape
    results = []
    for b in range(B):
        img = np.pad(x_np[b, 0].astype(np.float32), 1)
        gx = np.zeros((M, N), np.float32)
        gy = np.zeros((M, N), np.float32)
        for a in range(3):
            for c in range(3):
                win = img[a:a + M, c:c + N]
                gx += _SOBEL_X[a, c] * win
                gy += _SOBEL_Y[a, c] * win
        mag = np.sqrt(gx * gx + gy * gy)
        cos = np.stack([_COS[i] * gx + _SIN[i] * gy for i in range(8)], 0)
        mx = cos.max(0, keepdims=True)
        hist = np.where(cos == mx, mag[None], 0.0).astype(np.float32)
        hp = np.pad(hist, ((0, 0), (2, 2), (2, 2)))
        out = np.zeros((8, M + 1, N + 1), np.float32)
        for di in range(4):
            for dj in range(4):
                out += hp[:, di:di + M + 1, dj:dj + N + 1]
        results.append(out)
    return np.stack(results, 0)


if __name__ == "__main__":
    key = jax.random.PRNGKey(0)
    k1, k2 = jax.random.split(key)

    # small image: single row tile
    B, M, N = 2, 1, 16
    M = 16
    x1 = jax.random.normal(k1, (B, 1, M, N), dtype=jnp.float32)
    y1 = jax.block_until_ready(siftnet_forward(x1))
    assert y1.shape == (B, 8, M + 1, N + 1), y1.shape
    np.testing.assert_allclose(np.asarray(y1), _siftnet_reference(np.asarray(x1)),
                               rtol=1e-4, atol=1e-4)

    # taller image: exercises multiple row tiles and the 8-row halo path
    B2, M2, N2 = 1, 40, 24
    x2 = jax.random.normal(k2, (B2, 1, M2, N2), dtype=jnp.float32)
    y2 = jax.block_until_ready(siftnet_forward(x2))
    assert y2.shape == (B2, 8, M2 + 1, N2 + 1), y2.shape
    np.testing.assert_allclose(np.asarray(y2), _siftnet_reference(np.asarray(x2)),
                               rtol=1e-4, atol=1e-4)

    # padded-output path (no wrapper slice; fringe zeroed in-kernel)
    yp = jax.block_until_ready(siftnet_forward(x2, return_padded=True))
    np.testing.assert_allclose(np.asarray(yp[:, :, :M2 + 1, :N2 + 1]),
                               np.asarray(y2), rtol=1e-4, atol=1e-4)

    print("KERNEL_OK")
</pallas_src>

<mosaic_0001>
module attributes {stable_mosaic.version = 11 : i64} {
  func.func @kernel(%arg0: i32, %arg1: i32, %arg2: memref<1x24x128xf32, #tpu.memory_space<vmem>>, %arg3: memref<1x8x128xf32, #tpu.memory_space<vmem>>, %arg4: memref<1x8x24x128xf32, #tpu.memory_space<vmem>>) attributes {dimension_semantics = [#tpu.dimension_semantics<parallel>, #tpu.dimension_semantics<parallel>], iteration_bounds = array<i64: 2, 1>, scalar_prefetch = 0 : i64, scratch_operands = 0 : i64, tpu.core_type = #tpu.core_type<tc>, window_params = [{transform_indices = @transform_0, window_bounds = array<i64: 1, 24, 128>}, {transform_indices = @transform_1, window_bounds = array<i64: 1, 8, 128>}, {transform_indices = @transform_2, window_bounds = array<i64: 1, 8, 24, 128>}]} {
    %c24_i32 = arith.constant 24 : i32
    %0 = arith.muli %arg1, %c24_i32 : i32
    %c0 = arith.constant 0 : index
    %c0_0 = arith.constant 0 : index
    %c0_1 = arith.constant 0 : index
    %1 = vector.load %arg2[%c0, %c0_0, %c0_1] : memref<1x24x128xf32, #tpu.memory_space<vmem>>, vector<1x24x128xf32>
    %2 = vector.shape_cast %1 : vector<1x24x128xf32> to vector<24x128xf32>
    %c0_2 = arith.constant 0 : index
    %c0_3 = arith.constant 0 : index
    %c0_4 = arith.constant 0 : index
    %3 = vector.load %arg3[%c0_2, %c0_3, %c0_4] : memref<1x8x128xf32, #tpu.memory_space<vmem>>, vector<1x8x128xf32>
    %4 = vector.shape_cast %3 : vector<1x8x128xf32> to vector<8x128xf32>
    %5 = tpu.concatenate %2, %4 in 0 : vector<24x128xf32>, vector<8x128xf32> -> vector<32x128xf32>
    %6 = vector.extract_strided_slice %5 {offsets = [0, 0], sizes = [32, 126], strides = [1, 1]} : vector<32x128xf32> to vector<32x126xf32>
    %7 = vector.extract_strided_slice %5 {offsets = [0, 1], sizes = [32, 126], strides = [1, 1]} : vector<32x128xf32> to vector<32x126xf32>
    %8 = vector.extract_strided_slice %5 {offsets = [0, 2], sizes = [32, 126], strides = [1, 1]} : vector<32x128xf32> to vector<32x126xf32>
    %9 = arith.subf %8, %6 : vector<32x126xf32>
    %cst = arith.constant 2.000000e+00 : f32
    %10 = vector.broadcast %cst : f32 to vector<32x126xf32>
    %11 = arith.mulf %10, %7 : vector<32x126xf32>
    %12 = arith.addf %6, %11 : vector<32x126xf32>
    %13 = arith.addf %12, %8 : vector<32x126xf32>
    %14 = vector.extract_strided_slice %9 {offsets = [0, 0], sizes = [27, 126], strides = [1, 1]} : vector<32x126xf32> to vector<27x126xf32>
    %15 = vector.extract_strided_slice %9 {offsets = [1, 0], sizes = [27, 126], strides = [1, 1]} : vector<32x126xf32> to vector<27x126xf32>
    %cst_5 = arith.constant 2.000000e+00 : f32
    %16 = vector.broadcast %cst_5 : f32 to vector<27x126xf32>
    %17 = arith.mulf %16, %15 : vector<27x126xf32>
    %18 = arith.addf %14, %17 : vector<27x126xf32>
    %19 = vector.extract_strided_slice %9 {offsets = [2, 0], sizes = [27, 126], strides = [1, 1]} : vector<32x126xf32> to vector<27x126xf32>
    %20 = arith.addf %18, %19 : vector<27x126xf32>
    %21 = vector.extract_strided_slice %13 {offsets = [2, 0], sizes = [27, 126], strides = [1, 1]} : vector<32x126xf32> to vector<27x126xf32>
    %22 = vector.extract_strided_slice %13 {offsets = [0, 0], sizes = [27, 126], strides = [1, 1]} : vector<32x126xf32> to vector<27x126xf32>
    %23 = arith.subf %21, %22 : vector<27x126xf32>
    %24 = tpu.iota {dimensions = array<i32: 0>} : vector<27x126xi32>
    %25 = vector.broadcast %0 : i32 to vector<27x126xi32>
    %26 = arith.addi %24, %25 : vector<27x126xi32>
    %27 = tpu.iota {dimensions = array<i32: 1>} : vector<27x126xi32>
    %c2_i32 = arith.constant 2 : i32
    %28 = vector.broadcast %c2_i32 : i32 to vector<27x126xi32>
    %29 = arith.cmpi sge, %26, %28 : vector<27x126xi32>
    %c17_i32 = arith.constant 17 : i32
    %30 = vector.broadcast %c17_i32 : i32 to vector<27x126xi32>
    %31 = arith.cmpi sle, %26, %30 : vector<27x126xi32>
    %32 = arith.andi %29, %31 : vector<27x126xi1>
    %c2_i32_6 = arith.constant 2 : i32
    %33 = vector.broadcast %c2_i32_6 : i32 to vector<27x126xi32>
    %34 = arith.cmpi sge, %27, %33 : vector<27x126xi32>
    %35 = arith.andi %32, %34 : vector<27x126xi1>
    %c17_i32_7 = arith.constant 17 : i32
    %36 = vector.broadcast %c17_i32_7 : i32 to vector<27x126xi32>
    %37 = arith.cmpi sle, %27, %36 : vector<27x126xi32>
    %38 = arith.andi %35, %37 : vector<27x126xi1>
    %39 = arith.mulf %20, %20 : vector<27x126xf32>
    %40 = arith.mulf %23, %23 : vector<27x126xf32>
    %41 = arith.addf %39, %40 : vector<27x126xf32>
    %42 = math.sqrt %41 : vector<27x126xf32>
    %cst_8 = arith.constant 0.000000e+00 : f32
    %43 = vector.broadcast %cst_8 : f32 to vector<27x126xf32>
    %44 = arith.select %38, %42, %43 : vector<27x126xi1>, vector<27x126xf32>
    %cst_9 = arith.constant 0.923879504 : f32
    %45 = vector.broadcast %cst_9 : f32 to vector<27x126xf32>
    %46 = arith.mulf %45, %20 : vector<27x126xf32>
    %cst_10 = arith.constant 0.382683426 : f32
    %47 = vector.broadcast %cst_10 : f32 to vector<27x126xf32>
    %48 = arith.mulf %47, %23 : vector<27x126xf32>
    %49 = arith.addf %46, %48 : vector<27x126xf32>
    %cst_11 = arith.constant 0.382683426 : f32
    %50 = vector.broadcast %cst_11 : f32 to vector<27x126xf32>
    %51 = arith.mulf %50, %20 : vector<27x126xf32>
    %cst_12 = arith.constant 0.923879504 : f32
    %52 = vector.broadcast %cst_12 : f32 to vector<27x126xf32>
    %53 = arith.mulf %52, %23 : vector<27x126xf32>
    %54 = arith.addf %51, %53 : vector<27x126xf32>
    %cst_13 = arith.constant -0.382683426 : f32
    %55 = vector.broadcast %cst_13 : f32 to vector<27x126xf32>
    %56 = arith.mulf %55, %20 : vector<27x126xf32>
    %cst_14 = arith.constant 0.923879504 : f32
    %57 = vector.broadcast %cst_14 : f32 to vector<27x126xf32>
    %58 = arith.mulf %57, %23 : vector<27x126xf32>
    %59 = arith.addf %56, %58 : vector<27x126xf32>
    %cst_15 = arith.constant -0.923879504 : f32
    %60 = vector.broadcast %cst_15 : f32 to vector<27x126xf32>
    %61 = arith.mulf %60, %20 : vector<27x126xf32>
    %cst_16 = arith.constant 0.382683426 : f32
    %62 = vector.broadcast %cst_16 : f32 to vector<27x126xf32>
    %63 = arith.mulf %62, %23 : vector<27x126xf32>
    %64 = arith.addf %61, %63 : vector<27x126xf32>
    %cst_17 = arith.constant -0.923879504 : f32
    %65 = vector.broadcast %cst_17 : f32 to vector<27x126xf32>
    %66 = arith.mulf %65, %20 : vector<27x126xf32>
    %cst_18 = arith.constant -0.382683426 : f32
    %67 = vector.broadcast %cst_18 : f32 to vector<27x126xf32>
    %68 = arith.mulf %67, %23 : vector<27x126xf32>
    %69 = arith.addf %66, %68 : vector<27x126xf32>
    %cst_19 = arith.constant -0.382683426 : f32
    %70 = vector.broadcast %cst_19 : f32 to vector<27x126xf32>
    %71 = arith.mulf %70, %20 : vector<27x126xf32>
    %cst_20 = arith.constant -0.923879504 : f32
    %72 = vector.broadcast %cst_20 : f32 to vector<27x126xf32>
    %73 = arith.mulf %72, %23 : vector<27x126xf32>
    %74 = arith.addf %71, %73 : vector<27x126xf32>
    %cst_21 = arith.constant 0.382683426 : f32
    %75 = vector.broadcast %cst_21 : f32 to vector<27x126xf32>
    %76 = arith.mulf %75, %20 : vector<27x126xf32>
    %cst_22 = arith.constant -0.923879504 : f32
    %77 = vector.broadcast %cst_22 : f32 to vector<27x126xf32>
    %78 = arith.mulf %77, %23 : vector<27x126xf32>
    %79 = arith.addf %76, %78 : vector<27x126xf32>
    %cst_23 = arith.constant 0.923879504 : f32
    %80 = vector.broadcast %cst_23 : f32 to vector<27x126xf32>
    %81 = arith.mulf %80, %20 : vector<27x126xf32>
    %cst_24 = arith.constant -0.382683426 : f32
    %82 = vector.broadcast %cst_24 : f32 to vector<27x126xf32>
    %83 = arith.mulf %82, %23 : vector<27x126xf32>
    %84 = arith.addf %81, %83 : vector<27x126xf32>
    %85 = arith.maximumf %49, %54 : vector<27x126xf32>
    %86 = arith.maximumf %59, %64 : vector<27x126xf32>
    %87 = arith.maximumf %85, %86 : vector<27x126xf32>
    %88 = arith.maximumf %69, %74 : vector<27x126xf32>
    %89 = arith.maximumf %79, %84 : vector<27x126xf32>
    %90 = arith.maximumf %88, %89 : vector<27x126xf32>
    %91 = arith.maximumf %87, %90 : vector<27x126xf32>
    %92 = arith.cmpf oeq, %49, %91 : vector<27x126xf32>
    %cst_25 = arith.constant 0.000000e+00 : f32
    %93 = vector.broadcast %cst_25 : f32 to vector<27x126xf32>
    %94 = arith.select %92, %44, %93 : vector<27x126xi1>, vector<27x126xf32>
    %95 = vector.extract_strided_slice %94 {offsets = [0, 0], sizes = [26, 126], strides = [1, 1]} : vector<27x126xf32> to vector<26x126xf32>
    %96 = vector.extract_strided_slice %94 {offsets = [1, 0], sizes = [26, 126], strides = [1, 1]} : vector<27x126xf32> to vector<26x126xf32>
    %97 = arith.addf %95, %96 : vector<26x126xf32>
    %98 = vector.extract_strided_slice %97 {offsets = [0, 0], sizes = [24, 126], strides = [1, 1]} : vector<26x126xf32> to vector<24x126xf32>
    %99 = vector.extract_strided_slice %97 {offsets = [2, 0], sizes = [24, 126], strides = [1, 1]} : vector<26x126xf32> to vector<24x126xf32>
    %100 = arith.addf %98, %99 : vector<24x126xf32>
    %101 = vector.extract_strided_slice %100 {offsets = [0, 0], sizes = [24, 125], strides = [1, 1]} : vector<24x126xf32> to vector<24x125xf32>
    %102 = vector.extract_strided_slice %100 {offsets = [0, 1], sizes = [24, 125], strides = [1, 1]} : vector<24x126xf32> to vector<24x125xf32>
    %103 = arith.addf %101, %102 : vector<24x125xf32>
    %104 = vector.extract_strided_slice %103 {offsets = [0, 0], sizes = [24, 123], strides = [1, 1]} : vector<24x125xf32> to vector<24x123xf32>
    %105 = vector.extract_strided_slice %103 {offsets = [0, 2], sizes = [24, 123], strides = [1, 1]} : vector<24x125xf32> to vector<24x123xf32>
    %106 = arith.addf %104, %105 : vector<24x123xf32>
    %c0_26 = arith.constant 0 : index
    %c0_27 = arith.constant 0 : index
    %c0_28 = arith.constant 0 : index
    %c0_29 = arith.constant 0 : index
    %107 = vector.load %arg4[%c0_26, %c0_27, %c0_28, %c0_29] : memref<1x8x24x128xf32, #tpu.memory_space<vmem>>, vector<1x1x24x123xf32>
    %108 = vector.shape_cast %107 : vector<1x1x24x123xf32> to vector<24x123xf32>
    %109 = vector.shape_cast %106 : vector<24x123xf32> to vector<1x1x24x123xf32>
    tpu.vector_store %arg4[%c0_26, %c0_27, %c0_28, %c0_29], %109 {strides = array<i32>} : memref<1x8x24x128xf32, #tpu.memory_space<vmem>>, vector<1x1x24x123xf32>,
    %110 = arith.cmpf oeq, %54, %91 : vector<27x126xf32>
    %cst_30 = arith.constant 0.000000e+00 : f32
    %111 = vector.broadcast %cst_30 : f32 to vector<27x126xf32>
    %112 = arith.select %110, %44, %111 : vector<27x126xi1>, vector<27x126xf32>
    %113 = vector.extract_strided_slice %112 {offsets = [0, 0], sizes = [26, 126], strides = [1, 1]} : vector<27x126xf32> to vector<26x126xf32>
    %114 = vector.extract_strided_slice %112 {offsets = [1, 0], sizes = [26, 126], strides = [1, 1]} : vector<27x126xf32> to vector<26x126xf32>
    %115 = arith.addf %113, %114 : vector<26x126xf32>
    %116 = vector.extract_strided_slice %115 {offsets = [0, 0], sizes = [24, 126], strides = [1, 1]} : vector<26x126xf32> to vector<24x126xf32>
    %117 = vector.extract_strided_slice %115 {offsets = [2, 0], sizes = [24, 126], strides = [1, 1]} : vector<26x126xf32> to vector<24x126xf32>
    %118 = arith.addf %116, %117 : vector<24x126xf32>
    %119 = vector.extract_strided_slice %118 {offsets = [0, 0], sizes = [24, 125], strides = [1, 1]} : vector<24x126xf32> to vector<24x125xf32>
    %120 = vector.extract_strided_slice %118 {offsets = [0, 1], sizes = [24, 125], strides = [1, 1]} : vector<24x126xf32> to vector<24x125xf32>
    %121 = arith.addf %119, %120 : vector<24x125xf32>
    %122 = vector.extract_strided_slice %121 {offsets = [0, 0], sizes = [24, 123], strides = [1, 1]} : vector<24x125xf32> to vector<24x123xf32>
    %123 = vector.extract_strided_slice %121 {offsets = [0, 2], sizes = [24, 123], strides = [1, 1]} : vector<24x125xf32> to vector<24x123xf32>
    %124 = arith.addf %122, %123 : vector<24x123xf32>
    %c0_31 = arith.constant 0 : index
    %c1 = arith.constant 1 : index
    %c0_32 = arith.constant 0 : index
    %c0_33 = arith.constant 0 : index
    %125 = vector.load %arg4[%c0_31, %c1, %c0_32, %c0_33] : memref<1x8x24x128xf32, #tpu.memory_space<vmem>>, vector<1x1x24x123xf32>
    %126 = vector.shape_cast %125 : vector<1x1x24x123xf32> to vector<24x123xf32>
    %127 = vector.shape_cast %124 : vector<24x123xf32> to vector<1x1x24x123xf32>
    tpu.vector_store %arg4[%c0_31, %c1, %c0_32, %c0_33], %127 {strides = array<i32>} : memref<1x8x24x128xf32, #tpu.memory_space<vmem>>, vector<1x1x24x123xf32>,
    %128 = arith.cmpf oeq, %59, %91 : vector<27x126xf32>
    %cst_34 = arith.constant 0.000000e+00 : f32
    %129 = vector.broadcast %cst_34 : f32 to vector<27x126xf32>
    %130 = arith.select %128, %44, %129 : vector<27x126xi1>, vector<27x126xf32>
    %131 = vector.extract_strided_slice %130 {offsets = [0, 0], sizes = [26, 126], strides = [1, 1]} : vector<27x126xf32> to vector<26x126xf32>
    %132 = vector.extract_strided_slice %130 {offsets = [1, 0], sizes = [26, 126], strides = [1, 1]} : vector<27x126xf32> to vector<26x126xf32>
    %133 = arith.addf %131, %132 : vector<26x126xf32>
    %134 = vector.extract_strided_slice %133 {offsets = [0, 0], sizes = [24, 126], strides = [1, 1]} : vector<26x126xf32> to vector<24x126xf32>
    %135 = vector.extract_strided_slice %133 {offsets = [2, 0], sizes = [24, 126], strides = [1, 1]} : vector<26x126xf32> to vector<24x126xf32>
    %136 = arith.addf %134, %135 : vector<24x126xf32>
    %137 = vector.extract_strided_slice %136 {offsets = [0, 0], sizes = [24, 125], strides = [1, 1]} : vector<24x126xf32> to vector<24x125xf32>
    %138 = vector.extract_strided_slice %136 {offsets = [0, 1], sizes = [24, 125], strides = [1, 1]} : vector<24x126xf32> to vector<24x125xf32>
    %139 = arith.addf %137, %138 : vector<24x125xf32>
    %140 = vector.extract_strided_slice %139 {offsets = [0, 0], sizes = [24, 123], strides = [1, 1]} : vector<24x125xf32> to vector<24x123xf32>
    %141 = vector.extract_strided_slice %139 {offsets = [0, 2], sizes = [24, 123], strides = [1, 1]} : vector<24x125xf32> to vector<24x123xf32>
    %142 = arith.addf %140, %141 : vector<24x123xf32>
    %c0_35 = arith.constant 0 : index
    %c2 = arith.constant 2 : index
    %c0_36 = arith.constant 0 : index
    %c0_37 = arith.constant 0 : index
    %143 = vector.load %arg4[%c0_35, %c2, %c0_36, %c0_37] : memref<1x8x24x128xf32, #tpu.memory_space<vmem>>, vector<1x1x24x123xf32>
    %144 = vector.shape_cast %143 : vector<1x1x24x123xf32> to vector<24x123xf32>
    %145 = vector.shape_cast %142 : vector<24x123xf32> to vector<1x1x24x123xf32>
    tpu.vector_store %arg4[%c0_35, %c2, %c0_36, %c0_37], %145 {strides = array<i32>} : memref<1x8x24x128xf32, #tpu.memory_space<vmem>>, vector<1x1x24x123xf32>,
    %146 = arith.cmpf oeq, %64, %91 : vector<27x126xf32>
    %cst_38 = arith.constant 0.000000e+00 : f32
    %147 = vector.broadcast %cst_38 : f32 to vector<27x126xf32>
    %148 = arith.select %146, %44, %147 : vector<27x126xi1>, vector<27x126xf32>
    %149 = vector.extract_strided_slice %148 {offsets = [0, 0], sizes = [26, 126], strides = [1, 1]} : vector<27x126xf32> to vector<26x126xf32>
    %150 = vector.extract_strided_slice %148 {offsets = [1, 0], sizes = [26, 126], strides = [1, 1]} : vector<27x126xf32> to vector<26x126xf32>
    %151 = arith.addf %149, %150 : vector<26x126xf32>
    %152 = vector.extract_strided_slice %151 {offsets = [0, 0], sizes = [24, 126], strides = [1, 1]} : vector<26x126xf32> to vector<24x126xf32>
    %153 = vector.extract_strided_slice %151 {offsets = [2, 0], sizes = [24, 126], strides = [1, 1]} : vector<26x126xf32> to vector<24x126xf32>
    %154 = arith.addf %152, %153 : vector<24x126xf32>
    %155 = vector.extract_strided_slice %154 {offsets = [0, 0], sizes = [24, 125], strides = [1, 1]} : vector<24x126xf32> to vector<24x125xf32>
    %156 = vector.extract_strided_slice %154 {offsets = [0, 1], sizes = [24, 125], strides = [1, 1]} : vector<24x126xf32> to vector<24x125xf32>
    %157 = arith.addf %155, %156 : vector<24x125xf32>
    %158 = vector.extract_strided_slice %157 {offsets = [0, 0], sizes = [24, 123], strides = [1, 1]} : vector<24x125xf32> to vector<24x123xf32>
    %159 = vector.extract_strided_slice %157 {offsets = [0, 2], sizes = [24, 123], strides = [1, 1]} : vector<24x125xf32> to vector<24x123xf32>
    %160 = arith.addf %158, %159 : vector<24x123xf32>
    %c0_39 = arith.constant 0 : index
    %c3 = arith.constant 3 : index
    %c0_40 = arith.constant 0 : index
    %c0_41 = arith.constant 0 : index
    %161 = vector.load %arg4[%c0_39, %c3, %c0_40, %c0_41] : memref<1x8x24x128xf32, #tpu.memory_space<vmem>>, vector<1x1x24x123xf32>
    %162 = vector.shape_cast %161 : vector<1x1x24x123xf32> to vector<24x123xf32>
    %163 = vector.shape_cast %160 : vector<24x123xf32> to vector<1x1x24x123xf32>
    tpu.vector_store %arg4[%c0_39, %c3, %c0_40, %c0_41], %163 {strides = array<i32>} : memref<1x8x24x128xf32, #tpu.memory_space<vmem>>, vector<1x1x24x123xf32>,
    %164 = arith.cmpf oeq, %69, %91 : vector<27x126xf32>
    %cst_42 = arith.constant 0.000000e+00 : f32
    %165 = vector.broadcast %cst_42 : f32 to vector<27x126xf32>
    %166 = arith.select %164, %44, %165 : vector<27x126xi1>, vector<27x126xf32>
    %167 = vector.extract_strided_slice %166 {offsets = [0, 0], sizes = [26, 126], strides = [1, 1]} : vector<27x126xf32> to vector<26x126xf32>
    %168 = vector.extract_strided_slice %166 {offsets = [1, 0], sizes = [26, 126], strides = [1, 1]} : vector<27x126xf32> to vector<26x126xf32>
    %169 = arith.addf %167, %168 : vector<26x126xf32>
    %170 = vector.extract_strided_slice %169 {offsets = [0, 0], sizes = [24, 126], strides = [1, 1]} : vector<26x126xf32> to vector<24x126xf32>
    %171 = vector.extract_strided_slice %169 {offsets = [2, 0], sizes = [24, 126], strides = [1, 1]} : vector<26x126xf32> to vector<24x126xf32>
    %172 = arith.addf %170, %171 : vector<24x126xf32>
    %173 = vector.extract_strided_slice %172 {offsets = [0, 0], sizes = [24, 125], strides = [1, 1]} : vector<24x126xf32> to vector<24x125xf32>
    %174 = vector.extract_strided_slice %172 {offsets = [0, 1], sizes = [24, 125], strides = [1, 1]} : vector<24x126xf32> to vector<24x125xf32>
    %175 = arith.addf %173, %174 : vector<24x125xf32>
    %176 = vector.extract_strided_slice %175 {offsets = [0, 0], sizes = [24, 123], strides = [1, 1]} : vector<24x125xf32> to vector<24x123xf32>
    %177 = vector.extract_strided_slice %175 {offsets = [0, 2], sizes = [24, 123], strides = [1, 1]} : vector<24x125xf32> to vector<24x123xf32>
    %178 = arith.addf %176, %177 : vector<24x123xf32>
    %c0_43 = arith.constant 0 : index
    %c4 = arith.constant 4 : index
    %c0_44 = arith.constant 0 : index
    %c0_45 = arith.constant 0 : index
    %179 = vector.load %arg4[%c0_43, %c4, %c0_44, %c0_45] : memref<1x8x24x128xf32, #tpu.memory_space<vmem>>, vector<1x1x24x123xf32>
    %180 = vector.shape_cast %179 : vector<1x1x24x123xf32> to vector<24x123xf32>
    %181 = vector.shape_cast %178 : vector<24x123xf32> to vector<1x1x24x123xf32>
    tpu.vector_store %arg4[%c0_43, %c4, %c0_44, %c0_45], %181 {strides = array<i32>} : memref<1x8x24x128xf32, #tpu.memory_space<vmem>>, vector<1x1x24x123xf32>,
    %182 = arith.cmpf oeq, %74, %91 : vector<27x126xf32>
    %cst_46 = arith.constant 0.000000e+00 : f32
    %183 = vector.broadcast %cst_46 : f32 to vector<27x126xf32>
    %184 = arith.select %182, %44, %183 : vector<27x126xi1>, vector<27x126xf32>
    %185 = vector.extract_strided_slice %184 {offsets = [0, 0], sizes = [26, 126], strides = [1, 1]} : vector<27x126xf32> to vector<26x126xf32>
    %186 = vector.extract_strided_slice %184 {offsets = [1, 0], sizes = [26, 126], strides = [1, 1]} : vector<27x126xf32> to vector<26x126xf32>
    %187 = arith.addf %185, %186 : vector<26x126xf32>
    %188 = vector.extract_strided_slice %187 {offsets = [0, 0], sizes = [24, 126], strides = [1, 1]} : vector<26x126xf32> to vector<24x126xf32>
    %189 = vector.extract_strided_slice %187 {offsets = [2, 0], sizes = [24, 126], strides = [1, 1]} : vector<26x126xf32> to vector<24x126xf32>
    %190 = arith.addf %188, %189 : vector<24x126xf32>
    %191 = vector.extract_strided_slice %190 {offsets = [0, 0], sizes = [24, 125], strides = [1, 1]} : vector<24x126xf32> to vector<24x125xf32>
    %192 = vector.extract_strided_slice %190 {offsets = [0, 1], sizes = [24, 125], strides = [1, 1]} : vector<24x126xf32> to vector<24x125xf32>
    %193 = arith.addf %191, %192 : vector<24x125xf32>
    %194 = vector.extract_strided_slice %193 {offsets = [0, 0], sizes = [24, 123], strides = [1, 1]} : vector<24x125xf32> to vector<24x123xf32>
    %195 = vector.extract_strided_slice %193 {offsets = [0, 2], sizes = [24, 123], strides = [1, 1]} : vector<24x125xf32> to vector<24x123xf32>
    %196 = arith.addf %194, %195 : vector<24x123xf32>
    %c0_47 = arith.constant 0 : index
    %c5 = arith.constant 5 : index
    %c0_48 = arith.constant 0 : index
    %c0_49 = arith.constant 0 : index
    %197 = vector.load %arg4[%c0_47, %c5, %c0_48, %c0_49] : memref<1x8x24x128xf32, #tpu.memory_space<vmem>>, vector<1x1x24x123xf32>
    %198 = vector.shape_cast %197 : vector<1x1x24x123xf32> to vector<24x123xf32>
    %199 = vector.shape_cast %196 : vector<24x123xf32> to vector<1x1x24x123xf32>
    tpu.vector_store %arg4[%c0_47, %c5, %c0_48, %c0_49], %199 {strides = array<i32>} : memref<1x8x24x128xf32, #tpu.memory_space<vmem>>, vector<1x1x24x123xf32>,
    %200 = arith.cmpf oeq, %79, %91 : vector<27x126xf32>
    %cst_50 = arith.constant 0.000000e+00 : f32
    %201 = vector.broadcast %cst_50 : f32 to vector<27x126xf32>
    %202 = arith.select %200, %44, %201 : vector<27x126xi1>, vector<27x126xf32>
    %203 = vector.extract_strided_slice %202 {offsets = [0, 0], sizes = [26, 126], strides = [1, 1]} : vector<27x126xf32> to vector<26x126xf32>
    %204 = vector.extract_strided_slice %202 {offsets = [1, 0], sizes = [26, 126], strides = [1, 1]} : vector<27x126xf32> to vector<26x126xf32>
    %205 = arith.addf %203, %204 : vector<26x126xf32>
    %206 = vector.extract_strided_slice %205 {offsets = [0, 0], sizes = [24, 126], strides = [1, 1]} : vector<26x126xf32> to vector<24x126xf32>
    %207 = vector.extract_strided_slice %205 {offsets = [2, 0], sizes = [24, 126], strides = [1, 1]} : vector<26x126xf32> to vector<24x126xf32>
    %208 = arith.addf %206, %207 : vector<24x126xf32>
    %209 = vector.extract_strided_slice %208 {offsets = [0, 0], sizes = [24, 125], strides = [1, 1]} : vector<24x126xf32> to vector<24x125xf32>
    %210 = vector.extract_strided_slice %208 {offsets = [0, 1], sizes = [24, 125], strides = [1, 1]} : vector<24x126xf32> to vector<24x125xf32>
    %211 = arith.addf %209, %210 : vector<24x125xf32>
    %212 = vector.extract_strided_slice %211 {offsets = [0, 0], sizes = [24, 123], strides = [1, 1]} : vector<24x125xf32> to vector<24x123xf32>
    %213 = vector.extract_strided_slice %211 {offsets = [0, 2], sizes = [24, 123], strides = [1, 1]} : vector<24x125xf32> to vector<24x123xf32>
    %214 = arith.addf %212, %213 : vector<24x123xf32>
    %c0_51 = arith.constant 0 : index
    %c6 = arith.constant 6 : index
    %c0_52 = arith.constant 0 : index
    %c0_53 = arith.constant 0 : index
    %215 = vector.load %arg4[%c0_51, %c6, %c0_52, %c0_53] : memref<1x8x24x128xf32, #tpu.memory_space<vmem>>, vector<1x1x24x123xf32>
    %216 = vector.shape_cast %215 : vector<1x1x24x123xf32> to vector<24x123xf32>
    %217 = vector.shape_cast %214 : vector<24x123xf32> to vector<1x1x24x123xf32>
    tpu.vector_store %arg4[%c0_51, %c6, %c0_52, %c0_53], %217 {strides = array<i32>} : memref<1x8x24x128xf32, #tpu.memory_space<vmem>>, vector<1x1x24x123xf32>,
    %218 = arith.cmpf oeq, %84, %91 : vector<27x126xf32>
    %cst_54 = arith.constant 0.000000e+00 : f32
    %219 = vector.broadcast %cst_54 : f32 to vector<27x126xf32>
    %220 = arith.select %218, %44, %219 : vector<27x126xi1>, vector<27x126xf32>
    %221 = vector.extract_strided_slice %220 {offsets = [0, 0], sizes = [26, 126], strides = [1, 1]} : vector<27x126xf32> to vector<26x126xf32>
    %222 = vector.extract_strided_slice %220 {offsets = [1, 0], sizes = [26, 126], strides = [1, 1]} : vector<27x126xf32> to vector<26x126xf32>
    %223 = arith.addf %221, %222 : vector<26x126xf32>
    %224 = vector.extract_strided_slice %223 {offsets = [0, 0], sizes = [24, 126], strides = [1, 1]} : vector<26x126xf32> to vector<24x126xf32>
    %225 = vector.extract_strided_slice %223 {offsets = [2, 0], sizes = [24, 126], strides = [1, 1]} : vector<26x126xf32> to vector<24x126xf32>
    %226 = arith.addf %224, %225 : vector<24x126xf32>
    %227 = vector.extract_strided_slice %226 {offsets = [0, 0], sizes = [24, 125], strides = [1, 1]} : vector<24x126xf32> to vector<24x125xf32>
    %228 = vector.extract_strided_slice %226 {offsets = [0, 1], sizes = [24, 125], strides = [1, 1]} : vector<24x126xf32> to vector<24x125xf32>
    %229 = arith.addf %227, %228 : vector<24x125xf32>
    %230 = vector.extract_strided_slice %229 {offsets = [0, 0], sizes = [24, 123], strides = [1, 1]} : vector<24x125xf32> to vector<24x123xf32>
    %231 = vector.extract_strided_slice %229 {offsets = [0, 2], sizes = [24, 123], strides = [1, 1]} : vector<24x125xf32> to vector<24x123xf32>
    %232 = arith.addf %230, %231 : vector<24x123xf32>
    %c0_55 = arith.constant 0 : index
    %c7 = arith.constant 7 : index
    %c0_56 = arith.constant 0 : index
    %c0_57 = arith.constant 0 : index
    %233 = vector.load %arg4[%c0_55, %c7, %c0_56, %c0_57] : memref<1x8x24x128xf32, #tpu.memory_space<vmem>>, vector<1x1x24x123xf32>
    %234 = vector.shape_cast %233 : vector<1x1x24x123xf32> to vector<24x123xf32>
    %235 = vector.shape_cast %232 : vector<24x123xf32> to vector<1x1x24x123xf32>
    tpu.vector_store %arg4[%c0_55, %c7, %c0_56, %c0_57], %235 {strides = array<i32>} : memref<1x8x24x128xf32, #tpu.memory_space<vmem>>, vector<1x1x24x123xf32>,
    return
  }
  func.func @transform_0(%arg0: i32, %arg1: i32) -> (i32, i32, i32) {
    %c0_i32 = arith.constant 0 : i32
    %c0_i32_0 = arith.constant 0 : i32
    return %arg0, %arg1, %c0_i32 : i32, i32, i32
  }
  func.func @transform_1(%arg0: i32, %arg1: i32) -> (i32, i32, i32) {
    %c1_i32 = arith.constant 1 : i32
    %0 = arith.addi %arg1, %c1_i32 : i32
    %c3_i32 = arith.constant 3 : i32
    %1 = arith.muli %0, %c3_i32 : i32
    %c0_i32 = arith.constant 0 : i32
    %c0_i32_0 = arith.constant 0 : i32
    return %arg0, %1, %c0_i32 : i32, i32, i32
  }
  func.func @transform_2(%arg0: i32, %arg1: i32) -> (i32, i32, i32, i32) {
    %c0_i32 = arith.constant 0 : i32
    %c0_i32_0 = arith.constant 0 : i32
    %c0_i32_1 = arith.constant 0 : i32
    return %arg0, %c0_i32, %arg1, %c0_i32_0 : i32, i32, i32, i32
  }
}

</mosaic_0001>

<llo_original>
// kernel: tpu_custom_call.1
$region0: #{tpu_custom_call.1}
  #allocation0 [shape = 'u32[]', space=smem, size = 0x4, offset = 0x4, fixed_abs, tag = 'smem constant byte address 0x4 - core index']
  #allocation1 [shape = 'u32[144,128]{1,0:T(1,128)}', space=vmem, size = 0x12000, scoped, tag = 'internal scratch']
  %s0 = inlined_call_operand.hbm [shape: f32[2,32,128], index: 0, kind: input, shape index: {}]
  %s1 = inlined_call_operand.hbm [shape: f32[2,32,128], index: 1, kind: input, shape index: {}]
  %s2 = inlined_call_operand.hbm [shape: f32[2,8,24,128], index: 2, kind: output, shape index: {}]
  %s3 = sld [smem:[#allocation0]]
  $region49: #{tpu_custom_call.1} parent=0
    _
  %s5 = ssub.s32 1, %s3
  %s6 = scalar_select 0, %s5, %s3
  $region1: #{tpu_custom_call.1} parent=0
    #allocation2 [shape = 'u8[24576]{0}', space=vmem, size = 0x6000, scoped, tag = 'input window, operand 0']
    #allocation3 [shape = 's32[2]{0}', space=sflag, size = 0x8, scoped, tag = 'scoped memory for tpu_custom_call.1']
    #allocation4 [shape = 's32[2]{0}', space=sflag, size = 0x8, scoped, tag = 'scoped memory for tpu_custom_call.1']
    #allocation5 [shape = 'u8[8192]{0}', space=vmem, size = 0x2000, scoped, tag = 'input window, operand 1']
    #allocation6 [shape = 's32[2]{0}', space=sflag, size = 0x8, scoped, tag = 'scoped memory for tpu_custom_call.1']
    #allocation7 [shape = 'u8[196608]{0}', space=vmem, size = 0x30000, scoped, tag = 'output window, operand 0']
    %7 = vsyncpa [#allocation3], 0
    %s8 = scalar_lea.sflag [#allocation3], 1
    %9 = vsyncpa %s8, 0
    %10 = vsyncpa [#allocation6], 0
    %s11 = scalar_lea.sflag [#allocation6], 1
    %12 = vsyncpa %s11, 0
    %13 = vsyncpa [#allocation4], 0
    %s14 = scalar_lea.sflag [#allocation4], 1
    %15 = vsyncpa %s14, 0
    loop: start=0, step=1, limit=4
    $region2: #{tpu_custom_call.1} parent=1 // loop_pre_header
      _
    $region3: #{tpu_custom_call.1} parent=1 // loop_header
      %s17 = sphi 0, %s21
      %p18 = scmp.ge.s32.totalorder %s17, 4
      %s24 = sphi 0, %s36
      %s25 = sphi 0, %s32
      %s26 = sphi 0, %s24
      %s27 = sphi 0, %s25
      %s28 = sphi 0, %s26
      %s29 = sphi 0, %s27
      %s41 = sphi 0, %s43
      %s44 = sphi 0, %s41
      %s45 = sphi 0, %s44
      %s61 = sphi 0, %s45
      %s73 = sphi 0, %s75
      %s76 = sphi 0, %s73
      %s77 = sphi 0, %s76
      %s93 = sphi 0, %s77
      %s101 = sphi 0, %s103
      %s104 = sphi 0, %s101
      %s105 = sphi 0, %s104
      %s121 = sphi 0, %s105
    $region4: #{tpu_custom_call.1} parent=1 // loop_header_branch
      %20 = sbr.rel (%p18) target = $region8
    $region5: #{tpu_custom_call.1} parent=1 // loop_body
      %s22 = ssub.s32 %s17, 1
      %s23 = ssub.s32 %s17, 2
      %s30 = sadd.s32 1, %s25
      %p31 = scmp.ge.s32.totalorder %s30, 1
      %s32 = scalar_select %p31, 0, %s30
      %s33 = sadd.s32 1, %s24
      %s34 = scalar_select %p31, %s33, %s24
      %p35 = scmp.ge.s32.totalorder %s34, 2
      %s36 = scalar_select %p35, 0, %s34
      %s37 = ssub.s32 %s24, %s36
      %s38 = ssub.s32 %s25, %s32
      %s39 = sor.u32 %s37, %s38
      %p40 = scmp.eq.s32.totalorder %s39, 0
      %s42 = sadd.s32 %s41, 1
      %s43 = scalar_select %p40, %s41, %s42
      %p46 = pneg %p40
      %p47 = scmp.eq.s32.totalorder %s17, 1
      %p48 = por %p46, %p47
      %p49 = scmp.ne.s32.totalorder %s41, %s44
      %p50 = scmp.eq.s32.totalorder %s17, 0
      %p51 = por %p49, %p50
      %p52 = scmp.ne.s32.totalorder %s41, %s44
      %p53 = scmp.eq.s32.totalorder %s22, 1
      %p54 = por %p52, %p53
      %p55 = scmp.ne.s32.totalorder %s44, %s45
      %p56 = scmp.eq.s32.totalorder %s22, 0
      %p57 = por %p55, %p56
      %p58 = scmp.ne.s32.totalorder %s44, %s45
      %p59 = scmp.eq.s32.totalorder %s23, 1
      %p60 = por %p58, %p59
      %p62 = scmp.ne.s32.totalorder %s45, %s61
      %p63 = scmp.eq.s32.totalorder %s23, 0
      %p64 = por %p62, %p63
      %s65 = sadd.s32 %s25, 1
      %s66 = smul.u32 %s65, 3
      %s67 = sadd.s32 %s32, 1
      %s68 = smul.u32 %s67, 3
      %s69 = ssub.s32 %s24, %s36
      %s70 = ssub.s32 %s66, %s68
      %s71 = sor.u32 %s69, %s70
      %p72 = scmp.eq.s32.totalorder %s71, 0
      %s74 = sadd.s32 %s73, 1
      %s75 = scalar_select %p72, %s73, %s74
      %p78 = pneg %p72
      %p79 = scmp.eq.s32.totalorder %s17, 1
      %p80 = por %p78, %p79
      %p81 = scmp.ne.s32.totalorder %s73, %s76
      %p82 = scmp.eq.s32.totalorder %s17, 0
      %p83 = por %p81, %p82
      %p84 = scmp.ne.s32.totalorder %s73, %s76
      %p85 = scmp.eq.s32.totalorder %s22, 1
      %p86 = por %p84, %p85
      %p87 = scmp.ne.s32.totalorder %s76, %s77
      %p88 = scmp.eq.s32.totalorder %s22, 0
      %p89 = por %p87, %p88
      %p90 = scmp.ne.s32.totalorder %s76, %s77
      %p91 = scmp.eq.s32.totalorder %s23, 1
      %p92 = por %p90, %p91
      %p94 = scmp.ne.s32.totalorder %s77, %s93
      %p95 = scmp.eq.s32.totalorder %s23, 0
      %p96 = por %p94, %p95
      %s97 = ssub.s32 %s24, %s36
      %s98 = ssub.s32 %s25, %s32
      %s99 = sor.u32 %s97, %s98
      %p100 = scmp.eq.s32.totalorder %s99, 0
      %s102 = sadd.s32 %s101, 1
      %s103 = scalar_select %p100, %s101, %s102
      %p106 = pneg %p100
      %p107 = scmp.eq.s32.totalorder %s17, 1
      %p108 = por %p106, %p107
      %p109 = scmp.ne.s32.totalorder %s101, %s104
      %p110 = scmp.eq.s32.totalorder %s17, 0
      %p111 = por %p109, %p110
      %p112 = scmp.ne.s32.totalorder %s101, %s104
      %p113 = scmp.eq.s32.totalorder %s22, 1
      %p114 = por %p112, %p113
      %p115 = scmp.ne.s32.totalorder %s104, %s105
      %p116 = scmp.eq.s32.totalorder %s22, 0
      %p117 = por %p115, %p116
      %p118 = scmp.ne.s32.totalorder %s104, %s105
      %p119 = scmp.eq.s32.totalorder %s23, 1
      %p120 = por %p118, %p119
      %p122 = scmp.ne.s32.totalorder %s105, %s121
      %p123 = scmp.eq.s32.totalorder %s23, 0
      %p124 = por %p122, %p123
      %p125 = scmp.le.s32.totalorder 1, %s17
      %p126 = scmp.lt.s32.totalorder %s17, 3
      %p127 = pnand %p125, %p126
      %p128 = pneg %p127
      // Predicated region
      $region9: #{tpu_custom_call.1} parent=5 // pred_check
        _
      $region10: #{tpu_custom_call.1} parent=5 // pred_check_branch
        %130 = sbr.rel (%p127) target = $region12
      $region11: #{tpu_custom_call.1} parent=5 // pred_region
        %s131 = ssub.s32 %s17, 1
      $region12: #{tpu_custom_call.1} parent=5 // pred_fallthru
        _
      %p132 = scmp.lt.s32.totalorder %s17, 2
      // Predicated region
      $region13: #{tpu_custom_call.1} parent=5 // pred_check
        %p133 = pneg %p132
      $region14: #{tpu_custom_call.1} parent=5 // pred_check_branch
        %135 = sbr.rel (%p133) target = $region16
      $region15: #{tpu_custom_call.1} parent=5 // pred_region
        // Predicated region
        $region17: #{tpu_custom_call.1} parent=15 // pred_check
          %p136 = pneg %p51
        $region18: #{tpu_custom_call.1} parent=15 // pred_check_branch
          %138 = sbr.rel (%p136) target = $region20
        $region19: #{tpu_custom_call.1} parent=15 // pred_region
          %s139 = sand.u32 %s41, 1
          %s140 = scalar_lea.sflag [#allocation3], %s139
          %s141 = sand.u32 %s41, 1
          %s142 = smul.addr %s141, 24
          %s143 = scalar_lea.vmem [#allocation2], %s142
          %s144 = smul.u32 3, %s25
          %s145 = ssub.s32 4, %s144
          %p146 = scmp.lt.s32.totalorder %s145, 3
          %s147 = scalar_select %p146, %s145, 3
          %s148 = smul.u32 128, %s147
          %s150 = ssub.s32 384, %s148
          %151 = vsyncadd %s140, %s150
          %p152 = scmp.ne.s32.totalorder 0, %s148
          %s153 = smul.addr %s24, 4
          %s154 = sadd.s32 %s144, %s153
          %s155 = smul.addr %s154, 128
          %s156 = scalar_lea.hbm %s0, %s155
          %s157 = smul.u32 8, %s147
          %s158 = sshll.u32 %s143, 4
          %s159 = int_to_ptr.vmem [resolvable:$true] %s158
          %s160 = sshll.u32 %s157, 4
          %164 = dma.hbm_to_vmem [thread:$0]  (%p152), %s156, %s160, %s159, %s140, 128, 128, 8
        $region20: #{tpu_custom_call.1} parent=15 // pred_fallthru
          _
        // Predicated region
        $region21: #{tpu_custom_call.1} parent=15 // pred_check
          %p165 = pneg %p83
        $region22: #{tpu_custom_call.1} parent=15 // pred_check_branch
          %167 = sbr.rel (%p165) target = $region24
        $region23: #{tpu_custom_call.1} parent=15 // pred_region
          %s168 = sand.u32 %s73, 1
          %s169 = scalar_lea.sflag [#allocation6], %s168
          %s170 = sand.u32 %s73, 1
          %s171 = smul.addr %s170, 8
          %s172 = scalar_lea.vmem [#allocation5], %s171
          %s173 = sadd.s32 %s25, 1
          %s174 = smul.u32 %s173, 3
          %s176 = ssub.s32 128, 128
          %177 = vsyncadd %s169, %s176
          %s178 = smul.addr %s24, 4
          %s179 = sadd.s32 %s174, %s178
          %s180 = smul.addr %s179, 128
          %s181 = scalar_lea.hbm %s1, %s180
          %s183 = sshll.u32 %s172, 4
          %s184 = int_to_ptr.vmem [resolvable:$true] %s183
          %186 = dma.hbm_to_vmem [thread:$0]  %s181, 128, %s184, %s169
        $region24: #{tpu_custom_call.1} parent=15 // pred_fallthru
          _
      $region16: #{tpu_custom_call.1} parent=5 // pred_fallthru
        _
      %p187 = scmp.le.s32.totalorder 1, %s17
      %p188 = scmp.lt.s32.totalorder %s17, 3
      %p189 = pnand %p187, %p188
      %p190 = pneg %p189
      // Predicated region
      $region25: #{tpu_custom_call.1} parent=5 // pred_check
        _
      $region26: #{tpu_custom_call.1} parent=5 // pred_check_branch
        %192 = sbr.rel (%p189) target = $region28
      $region27: #{tpu_custom_call.1} parent=5 // pred_region
        %s193 = ssub.s32 %s17, 1
        %s194 = sand.u32 %s44, 1
        %s195 = scalar_lea.sflag [#allocation3], %s194
        %s196 = sand.u32 %s44, 1
        %s197 = smul.addr %s196, 24
        %s198 = scalar_lea.vmem [#allocation2], %s197
        // Predicated region
        $region29: #{tpu_custom_call.1} parent=27 // pred_check
          %p199 = pneg %p57
        $region30: #{tpu_custom_call.1} parent=27 // pred_check_branch
          %201 = sbr.rel (%p199) target = $region32
        $region31: #{tpu_custom_call.1} parent=27 // pred_region
          %202 = dma.done %s195, 384
        $region32: #{tpu_custom_call.1} parent=27 // pred_fallthru
          _
        %s203 = sand.u32 %s76, 1
        %s204 = scalar_lea.sflag [#allocation6], %s203
        %s205 = sand.u32 %s76, 1
        %s206 = smul.addr %s205, 8
        %s207 = scalar_lea.vmem [#allocation5], %s206
        // Predicated region
        $region33: #{tpu_custom_call.1} parent=27 // pred_check
          %p208 = pneg %p89
        $region34: #{tpu_custom_call.1} parent=27 // pred_check_branch
          %210 = sbr.rel (%p208) target = $region36
        $region35: #{tpu_custom_call.1} parent=27 // pred_region
          %211 = dma.done %s204, 128
        $region36: #{tpu_custom_call.1} parent=27 // pred_fallthru
          _
        %s212 = sand.u32 %s44, 1
        %s213 = scalar_lea.sflag [#allocation3], %s212
        %s214 = sand.u32 %s44, 1
        %s215 = smul.addr %s214, 24
        %s216 = scalar_lea.vmem [#allocation2], %s215
        %p217 = pneg %p57
        %p218 = pneg %p54
        %s219 = sand.u32 %s76, 1
        %s220 = scalar_lea.sflag [#allocation6], %s219
        %s221 = sand.u32 %s76, 1
        %s222 = smul.addr %s221, 8
        %s223 = scalar_lea.vmem [#allocation5], %s222
        %p224 = pneg %p89
        %p225 = pneg %p86
        %p226 = pneg %p117
        %p227 = pneg %p114
        %s228 = sand.u32 %s104, 1
        %s229 = scalar_lea.sflag [#allocation4], %s228
        %s230 = sand.u32 %s104, 1
        %s231 = smul.addr %s230, 192
        %s232 = scalar_lea.vmem [#allocation7], %s231
        %s233 = smul.u32 3, %s27
        %s234 = ssub.s32 4, %s233
        %p235 = scmp.lt.s32.totalorder %s234, 3
        %s236 = scalar_select %p235, %s234, 3
        %s237 = smul.u32 128, %s236
        %s238 = sadd.s32 %s27, 1
        %s239 = smul.u32 %s238, 3
        %s240 = smul.u32 3, %s27
        %s241 = smul.u32 %s27, 24
        %v242 = vld [vmem:[%s198] sm:$0xff]
        %v243 = vld [vmem:[%s198 + $0x8] sm:$0xff]
        %v244 = vld [vmem:[%s198 + $0x10] sm:$0xff]
        %v245 = vld [vmem:[%s207] sm:$0xff]
        %250 = vrot.lane.b32.xlu0 %v242, 2
        %v251 = vpop.permute.xlu0 %250
        %252 = vrot.lane.b32.xlu0 %v243, 2
        %v253 = vpop.permute.xlu0 %252
        %254 = vrot.lane.b32.xlu0 %v244, 2
        %v255 = vpop.permute.xlu0 %254
        %256 = vrot.lane.b32.xlu0 %v245, 2
        %v257 = vpop.permute.xlu0 %256
        %v262 = vsub.f32 %v242, %v251
        %v263 = vsub.f32 %v243, %v253
        %v264 = vsub.f32 %v244, %v255
        %v265 = vsub.f32 %v245, %v257
        %v266 = vmul.f32 %v242, 2.0
        %v267 = vmul.f32 %v243, 2.0
        %v268 = vmul.f32 %v244, 2.0
        %v269 = vmul.f32 %v245, 2.0
        %274 = vrot.lane.b32.xlu0 %v266, 127
        %v275 = vpop.permute.xlu0 %274
        %276 = vrot.lane.b32.xlu0 %v267, 127
        %v277 = vpop.permute.xlu0 %276
        %278 = vrot.lane.b32.xlu0 %v268, 127
        %v279 = vpop.permute.xlu0 %278
        %280 = vrot.lane.b32.xlu0 %v269, 127
        %v281 = vpop.permute.xlu0 %280
        %v286 = vadd.f32 %v242, %v275
        %v287 = vadd.f32 %v243, %v277
        %v288 = vadd.f32 %v244, %v279
        %v289 = vadd.f32 %v245, %v281
        %290 = vrot.lane.b32.xlu0 %v242, 126
        %v291 = vpop.permute.xlu0 %290
        %292 = vrot.lane.b32.xlu0 %v243, 126
        %v293 = vpop.permute.xlu0 %292
        %294 = vrot.lane.b32.xlu0 %v244, 126
        %v295 = vpop.permute.xlu0 %294
        %296 = vrot.lane.b32.xlu0 %v245, 126
        %v297 = vpop.permute.xlu0 %296
        %v302 = vadd.f32 %v286, %v291
        %v303 = vadd.f32 %v287, %v293
        %v304 = vadd.f32 %v288, %v295
        %v305 = vadd.f32 %v289, %v297
        %v306 = vmul.f32 %v262, 2.0
        %v307 = vmul.f32 %v263, 2.0
        %v308 = vmul.f32 %v264, 2.0
        %v309 = vmul.f32 %v265, 2.0
        %vm314 = vcmask 1046528
        %v315 = vrot.slane %v306, 1
        %v316 = vrot.slane %v307, 1
        %v317 = vsel %vm314, %v315, %v316
        %v318 = vrot.slane %v308, 1
        %v319 = vsel %vm314, %v316, %v318
        %v320 = vrot.slane %v309, 1
        %v321 = vsel %vm314, %v318, %v320
        %v326 = vadd.f32 %v262, %v317
        %v327 = vadd.f32 %v263, %v319
        %v328 = vadd.f32 %v264, %v321
        %v329 = vadd.f32 %v265, %v320
        %vm334 = vcmask 1045504
        %v335 = vrot.slane %v262, 2
        %v336 = vrot.slane %v263, 2
        %v337 = vsel %vm334, %v335, %v336
        %v338 = vrot.slane %v264, 2
        %v339 = vsel %vm334, %v336, %v338
        %v340 = vrot.slane %v265, 2
        %v341 = vsel %vm334, %v338, %v340
        %v346 = vadd.f32 %v326, %v337
        %v347 = vadd.f32 %v327, %v339
        %v348 = vadd.f32 %v328, %v341
        %v349 = vadd.f32 %v329, %v340
        %vm354 = vcmask 1041408
        %v355 = vrot.slane %v302, 6
        %v356 = vrot.slane %v303, 6
        %v357 = vsel %vm354, %v355, %v356
        %v358 = vrot.slane %v304, 6
        %v359 = vsel %vm354, %v356, %v358
        %v360 = vrot.slane %v305, 6
        %v361 = vsel %vm354, %v358, %v360
        %v366 = vsub.f32 %v302, %v355
        %v367 = vsub.f32 %v303, %v357
        %v368 = vsub.f32 %v304, %v359
        %v369 = vsub.f32 %v305, %v361
        %v370 = vlaneseq
        %v371 = vshrl.u32 %v370, 7
        %v372 = vadd.s32 %v371, 8
        %v373 = vadd.s32 %v371, 16
        %v374 = vadd.s32 %v371, 24
        %v375 = vstv %s241
        %v376 = vadd.s32 %v371, %v375
        %v377 = vadd.s32 %v372, %v375
        %v378 = vadd.s32 %v373, %v375
        %v379 = vadd.s32 %v374, %v375
        %v380 = vlaneseq
        %v381 = vand.u32 %v380, 127
        %vm382 = vcmp.ge.s32.totalorder %v376, 2
        %vm383 = vcmp.ge.s32.totalorder %v377, 2
        %vm384 = vcmp.ge.s32.totalorder %v378, 2
        %vm385 = vcmp.ge.s32.totalorder %v379, 2
        %vm386 = vcmp.le.s32.totalorder %v376, 17
        %vm387 = vcmp.le.s32.totalorder %v377, 17
        %vm388 = vcmp.le.s32.totalorder %v378, 17
        %vm389 = vcmp.le.s32.totalorder %v379, 17
        %vm390 = vmand %vm382, %vm386
        %vm391 = vmand %vm383, %vm387
        %vm392 = vmand %vm384, %vm388
        %vm393 = vmand %vm385, %vm389
        %vm394 = vcmp.ge.s32.totalorder %v381, 2
        %vm395 = vmand %vm390, %vm394
        %vm396 = vmand %vm391, %vm394
        %vm397 = vmand %vm392, %vm394
        %vm398 = vmand %vm393, %vm394
        %vm399 = vcmp.le.s32.totalorder %v381, 17
        %vm400 = vmand %vm395, %vm399
        %vm401 = vmand %vm396, %vm399
        %vm402 = vmand %vm397, %vm399
        %vm403 = vmand %vm398, %vm399
        %v404 = vmul.f32 %v346, %v346
        %v405 = vmul.f32 %v347, %v347
        %v406 = vmul.f32 %v348, %v348
        %v407 = vmul.f32 %v349, %v349
        %v408 = vmul.f32 %v366, %v366
        %v409 = vmul.f32 %v367, %v367
        %v410 = vmul.f32 %v368, %v368
        %v411 = vmul.f32 %v369, %v369
        %v416 = vrot.slane %v408, 2
        %v417 = vrot.slane %v409, 2
        %v418 = vsel %vm334, %v416, %v417
        %v419 = vrot.slane %v410, 2
        %v420 = vsel %vm334, %v417, %v419
        %v421 = vrot.slane %v411, 2
        %v422 = vsel %vm334, %v419, %v421
        %423 = vrot.lane.b32.xlu0 %v418, 2
        %v424 = vpop.permute.xlu0 %423
        %425 = vrot.lane.b32.xlu0 %v420, 2
        %v426 = vpop.permute.xlu0 %425
        %427 = vrot.lane.b32.xlu0 %v422, 2
        %v428 = vpop.permute.xlu0 %427
        %429 = vrot.lane.b32.xlu0 %v421, 2
        %v430 = vpop.permute.xlu0 %429
        %v435 = vadd.f32 %v404, %v424
        %v436 = vadd.f32 %v405, %v426
        %v437 = vadd.f32 %v406, %v428
        %v438 = vadd.f32 %v407, %v430
        %v439 = vrsqrt.pop %v435
        %v440 = vmul.f32 %v435, %v439
        %vm441 = vcmp.eq.f32.partialorder %v435, inf
        %v442 = vsel %vm441, %v435, %v440
        %vm443 = vcmp.eq.f32.partialorder %v435, 0.0
        %v444 = vand.u32 %v435, 2147483648
        %v445 = vsel %vm443, %v444, %v442
        %v446 = vrsqrt.pop %v436
        %v447 = vmul.f32 %v436, %v446
        %vm448 = vcmp.eq.f32.partialorder %v436, inf
        %v449 = vsel %vm448, %v436, %v447
        %vm450 = vcmp.eq.f32.partialorder %v436, 0.0
        %v451 = vand.u32 %v436, 2147483648
        %v452 = vsel %vm450, %v451, %v449
        %v453 = vrsqrt.pop %v437
        %v454 = vmul.f32 %v437, %v453
        %vm455 = vcmp.eq.f32.partialorder %v437, inf
        %v456 = vsel %vm455, %v437, %v454
        %vm457 = vcmp.eq.f32.partialorder %v437, 0.0
        %v458 = vand.u32 %v437, 2147483648
        %v459 = vsel %vm457, %v458, %v456
        %v460 = vrsqrt.pop %v438
        %v461 = vmul.f32 %v438, %v460
        %vm462 = vcmp.eq.f32.partialorder %v438, inf
        %v463 = vsel %vm462, %v438, %v461
        %vm464 = vcmp.eq.f32.partialorder %v438, 0.0
        %v465 = vand.u32 %v438, 2147483648
        %v466 = vsel %vm464, %v465, %v463
        %471 = vrot.lane.b32.xlu0 %v445, 126
        %v472 = vpop.permute.xlu0 %471
        %473 = vrot.lane.b32.xlu0 %v452, 126
        %v474 = vpop.permute.xlu0 %473
        %475 = vrot.lane.b32.xlu0 %v459, 126
        %v476 = vpop.permute.xlu0 %475
        %477 = vrot.lane.b32.xlu0 %v466, 126
        %v478 = vpop.permute.xlu0 %477
        %v483 = vsel %vm400, %v472, 0.0
        %v484 = vsel %vm401, %v474, 0.0
        %v485 = vsel %vm402, %v476, 0.0
        %v486 = vsel %vm403, %v478, 0.0
        %v487 = vmul.f32 %v346, 0.9238795
        %v488 = vmul.f32 %v347, 0.9238795
        %v489 = vmul.f32 %v348, 0.9238795
        %v490 = vmul.f32 %v349, 0.9238795
        %v491 = vmul.f32 %v366, 0.38268343
        %v492 = vmul.f32 %v367, 0.38268343
        %v493 = vmul.f32 %v368, 0.38268343
        %v494 = vmul.f32 %v369, 0.38268343
        %v499 = vrot.slane %v491, 2
        %v500 = vrot.slane %v492, 2
        %v501 = vsel %vm334, %v499, %v500
        %v502 = vrot.slane %v493, 2
        %v503 = vsel %vm334, %v500, %v502
        %v504 = vrot.slane %v494, 2
        %v505 = vsel %vm334, %v502, %v504
        %506 = vrot.lane.b32.xlu0 %v501, 2
        %v507 = vpop.permute.xlu0 %506
        %508 = vrot.lane.b32.xlu0 %v503, 2
        %v509 = vpop.permute.xlu0 %508
        %510 = vrot.lane.b32.xlu0 %v505, 2
        %v511 = vpop.permute.xlu0 %510
        %512 = vrot.lane.b32.xlu0 %v504, 2
        %v513 = vpop.permute.xlu0 %512
        %v518 = vadd.f32 %v487, %v507
        %v519 = vadd.f32 %v488, %v509
        %v520 = vadd.f32 %v489, %v511
        %v521 = vadd.f32 %v490, %v513
        %v522 = vmul.f32 %v346, 0.38268343
        %v523 = vmul.f32 %v347, 0.38268343
        %v524 = vmul.f32 %v348, 0.38268343
        %v525 = vmul.f32 %v349, 0.38268343
        %v526 = vmul.f32 %v366, 0.9238795
        %v527 = vmul.f32 %v367, 0.9238795
        %v528 = vmul.f32 %v368, 0.9238795
        %v529 = vmul.f32 %v369, 0.9238795
        %v534 = vrot.slane %v526, 2
        %v535 = vrot.slane %v527, 2
        %v536 = vsel %vm334, %v534, %v535
        %v537 = vrot.slane %v528, 2
        %v538 = vsel %vm334, %v535, %v537
        %v539 = vrot.slane %v529, 2
        %v540 = vsel %vm334, %v537, %v539
        %541 = vrot.lane.b32.xlu0 %v536, 2
        %v542 = vpop.permute.xlu0 %541
        %543 = vrot.lane.b32.xlu0 %v538, 2
        %v544 = vpop.permute.xlu0 %543
        %545 = vrot.lane.b32.xlu0 %v540, 2
        %v546 = vpop.permute.xlu0 %545
        %547 = vrot.lane.b32.xlu0 %v539, 2
        %v548 = vpop.permute.xlu0 %547
        %v553 = vadd.f32 %v522, %v542
        %v554 = vadd.f32 %v523, %v544
        %v555 = vadd.f32 %v524, %v546
        %v556 = vadd.f32 %v525, %v548
        %v557 = vmul.f32 %v346, -0.38268343
        %v558 = vmul.f32 %v347, -0.38268343
        %v559 = vmul.f32 %v348, -0.38268343
        %v560 = vmul.f32 %v349, -0.38268343
        %v561 = vadd.f32 %v557, %v542
        %v562 = vadd.f32 %v558, %v544
        %v563 = vadd.f32 %v559, %v546
        %v564 = vadd.f32 %v560, %v548
        %v565 = vmul.f32 %v346, -0.9238795
        %v566 = vmul.f32 %v347, -0.9238795
        %v567 = vmul.f32 %v348, -0.9238795
        %v568 = vmul.f32 %v349, -0.9238795
        %v569 = vadd.f32 %v565, %v507
        %v570 = vadd.f32 %v566, %v509
        %v571 = vadd.f32 %v567, %v511
        %v572 = vadd.f32 %v568, %v513
        %v573 = vmul.f32 %v366, -0.38268343
        %v574 = vmul.f32 %v367, -0.38268343
        %v575 = vmul.f32 %v368, -0.38268343
        %v576 = vmul.f32 %v369, -0.38268343
        %v581 = vrot.slane %v573, 2
        %v582 = vrot.slane %v574, 2
        %v583 = vsel %vm334, %v581, %v582
        %v584 = vrot.slane %v575, 2
        %v585 = vsel %vm334, %v582, %v584
        %v586 = vrot.slane %v576, 2
        %v587 = vsel %vm334, %v584, %v586
        %588 = vrot.lane.b32.xlu0 %v583, 2
        %v589 = vpop.permute.xlu0 %588
        %590 = vrot.lane.b32.xlu0 %v585, 2
        %v591 = vpop.permute.xlu0 %590
        %592 = vrot.lane.b32.xlu0 %v587, 2
        %v593 = vpop.permute.xlu0 %592
        %594 = vrot.lane.b32.xlu0 %v586, 2
        %v595 = vpop.permute.xlu0 %594
        %v600 = vadd.f32 %v565, %v589
        %v601 = vadd.f32 %v566, %v591
        %v602 = vadd.f32 %v567, %v593
        %v603 = vadd.f32 %v568, %v595
        %v604 = vmul.f32 %v366, -0.9238795
        %v605 = vmul.f32 %v367, -0.9238795
        %v606 = vmul.f32 %v368, -0.9238795
        %v607 = vmul.f32 %v369, -0.9238795
        %v612 = vrot.slane %v604, 2
        %v613 = vrot.slane %v605, 2
        %v614 = vsel %vm334, %v612, %v613
        %v615 = vrot.slane %v606, 2
        %v616 = vsel %vm334, %v613, %v615
        %v617 = vrot.slane %v607, 2
        %v618 = vsel %vm334, %v615, %v617
        %619 = vrot.lane.b32.xlu0 %v614, 2
        %v620 = vpop.permute.xlu0 %619
        %621 = vrot.lane.b32.xlu0 %v616, 2
        %v622 = vpop.permute.xlu0 %621
        %623 = vrot.lane.b32.xlu0 %v618, 2
        %v624 = vpop.permute.xlu0 %623
        %625 = vrot.lane.b32.xlu0 %v617, 2
        %v626 = vpop.permute.xlu0 %625
        %v631 = vadd.f32 %v557, %v620
        %v632 = vadd.f32 %v558, %v622
        %v633 = vadd.f32 %v559, %v624
        %v634 = vadd.f32 %v560, %v626
        %v635 = vadd.f32 %v522, %v620
        %v636 = vadd.f32 %v523, %v622
        %v637 = vadd.f32 %v524, %v624
        %v638 = vadd.f32 %v525, %v626
        %v639 = vadd.f32 %v487, %v589
        %v640 = vadd.f32 %v488, %v591
        %v641 = vadd.f32 %v489, %v593
        %v642 = vadd.f32 %v490, %v595
        %v643 = vmax.f32 %v518, %v553
        %v644 = vmax.f32 %v519, %v554
        %v645 = vmax.f32 %v520, %v555
        %v646 = vmax.f32 %v521, %v556
        %v647 = vmax.f32 %v561, %v569
        %v648 = vmax.f32 %v562, %v570
        %v649 = vmax.f32 %v563, %v571
        %v650 = vmax.f32 %v564, %v572
        %v651 = vmax.f32 %v643, %v647
        %v652 = vmax.f32 %v644, %v648
        %v653 = vmax.f32 %v645, %v649
        %v654 = vmax.f32 %v646, %v650
        %v655 = vmax.f32 %v600, %v631
        %v656 = vmax.f32 %v601, %v632
        %v657 = vmax.f32 %v602, %v633
        %v658 = vmax.f32 %v603, %v634
        %v659 = vmax.f32 %v635, %v639
        %v660 = vmax.f32 %v636, %v640
        %v661 = vmax.f32 %v637, %v641
        %v662 = vmax.f32 %v638, %v642
        %v663 = vmax.f32 %v655, %v659
        %v664 = vmax.f32 %v656, %v660
        %v665 = vmax.f32 %v657, %v661
        %v666 = vmax.f32 %v658, %v662
        %v667 = vmax.f32 %v651, %v663
        %v668 = vmax.f32 %v652, %v664
        %v669 = vmax.f32 %v653, %v665
        %v670 = vmax.f32 %v654, %v666
        %vm671 = vcmp.eq.f32.partialorder %v518, %v667
        %vm672 = vcmp.eq.f32.partialorder %v519, %v668
        %vm673 = vcmp.eq.f32.partialorder %v520, %v669
        %vm674 = vcmp.eq.f32.partialorder %v521, %v670
        %679 = vrot.lane.b32.xlu0 %v483, 2
        %v680 = vpop.permute.xlu0 %679
        %681 = vrot.lane.b32.xlu0 %v484, 2
        %v682 = vpop.permute.xlu0 %681
        %683 = vrot.lane.b32.xlu0 %v485, 2
        %v684 = vpop.permute.xlu0 %683
        %685 = vrot.lane.b32.xlu0 %v486, 2
        %v686 = vpop.permute.xlu0 %685
        %v691 = vsel %vm671, %v680, 0.0
        %v692 = vsel %vm672, %v682, 0.0
        %v693 = vsel %vm673, %v684, 0.0
        %v694 = vsel %vm674, %v686, 0.0
        %v699 = vrot.slane %v691, 1
        %v700 = vrot.slane %v692, 1
        %v701 = vsel %vm314, %v699, %v700
        %v702 = vrot.slane %v693, 1
        %v703 = vsel %vm314, %v700, %v702
        %v704 = vrot.slane %v694, 1
        %v705 = vsel %vm314, %v702, %v704
        %v710 = vadd.f32 %v691, %v701
        %v711 = vadd.f32 %v692, %v703
        %v712 = vadd.f32 %v693, %v705
        %v713 = vadd.f32 %v694, %v704
        %v718 = vrot.slane %v710, 2
        %v719 = vrot.slane %v711, 2
        %v720 = vsel %vm334, %v718, %v719
        %v721 = vrot.slane %v712, 2
        %v722 = vsel %vm334, %v719, %v721
        %v723 = vrot.slane %v713, 2
        %v724 = vsel %vm334, %v721, %v723
        %v728 = vadd.f32 %v710, %v720
        %v729 = vadd.f32 %v711, %v722
        %v730 = vadd.f32 %v712, %v724
        %734 = vrot.lane.b32.xlu0 %v728, 127
        %v735 = vpop.permute.xlu0 %734
        %736 = vrot.lane.b32.xlu0 %v729, 127
        %v737 = vpop.permute.xlu0 %736
        %738 = vrot.lane.b32.xlu0 %v730, 127
        %v739 = vpop.permute.xlu0 %738
        %v743 = vadd.f32 %v728, %v735
        %v744 = vadd.f32 %v729, %v737
        %v745 = vadd.f32 %v730, %v739
        %749 = vrot.lane.b32.xlu0 %v743, 126
        %v750 = vpop.permute.xlu0 %749
        %751 = vrot.lane.b32.xlu0 %v744, 126
        %v752 = vpop.permute.xlu0 %751
        %753 = vrot.lane.b32.xlu0 %v745, 126
        %v754 = vpop.permute.xlu0 %753
        %v758 = vadd.f32 %v743, %v750
        %v759 = vadd.f32 %v744, %v752
        %v760 = vadd.f32 %v745, %v754
        %764 = vrot.lane.b32.xlu0 %v758, 126
        %v765 = vpop.permute.xlu0 %764
        %766 = vrot.lane.b32.xlu0 %v759, 126
        %v767 = vpop.permute.xlu0 %766
        %768 = vrot.lane.b32.xlu0 %v760, 126
        %v769 = vpop.permute.xlu0 %768
        %vm773 = vcmask 1006592
        %774 = vst.msk [vmem:[%s232] sm:$0xff] %vm773, %v765
        %775 = vst.msk [vmem:[%s232 + $0x8] sm:$0xff] %vm773, %v767
        %776 = vst.msk [vmem:[%s232 + $0x10] sm:$0xff] %vm773, %v769
        %vm777 = vcmp.eq.f32.partialorder %v553, %v667
        %vm778 = vcmp.eq.f32.partialorder %v554, %v668
        %vm779 = vcmp.eq.f32.partialorder %v555, %v669
        %vm780 = vcmp.eq.f32.partialorder %v556, %v670
        %v781 = vsel %vm777, %v680, 0.0
        %v782 = vsel %vm778, %v682, 0.0
        %v783 = vsel %vm779, %v684, 0.0
        %v784 = vsel %vm780, %v686, 0.0
        %v789 = vrot.slane %v781, 1
        %v790 = vrot.slane %v782, 1
        %v791 = vsel %vm314, %v789, %v790
        %v792 = vrot.slane %v783, 1
        %v793 = vsel %vm314, %v790, %v792
        %v794 = vrot.slane %v784, 1
        %v795 = vsel %vm314, %v792, %v794
        %v800 = vadd.f32 %v781, %v791
        %v801 = vadd.f32 %v782, %v793
        %v802 = vadd.f32 %v783, %v795
        %v803 = vadd.f32 %v784, %v794
        %v808 = vrot.slane %v800, 2
        %v809 = vrot.slane %v801, 2
        %v810 = vsel %vm334, %v808, %v809
        %v811 = vrot.slane %v802, 2
        %v812 = vsel %vm334, %v809, %v811
        %v813 = vrot.slane %v803, 2
        %v814 = vsel %vm334, %v811, %v813
        %v818 = vadd.f32 %v800, %v810
        %v819 = vadd.f32 %v801, %v812
        %v820 = vadd.f32 %v802, %v814
        %824 = vrot.lane.b32.xlu0 %v818, 127
        %v825 = vpop.permute.xlu0 %824
        %826 = vrot.lane.b32.xlu0 %v819, 127
        %v827 = vpop.permute.xlu0 %826
        %828 = vrot.lane.b32.xlu0 %v820, 127
        %v829 = vpop.permute.xlu0 %828
        %v833 = vadd.f32 %v818, %v825
        %v834 = vadd.f32 %v819, %v827
        %v835 = vadd.f32 %v820, %v829
        %839 = vrot.lane.b32.xlu0 %v833, 126
        %v840 = vpop.permute.xlu0 %839
        %841 = vrot.lane.b32.xlu0 %v834, 126
        %v842 = vpop.permute.xlu0 %841
        %843 = vrot.lane.b32.xlu0 %v835, 126
        %v844 = vpop.permute.xlu0 %843
        %v848 = vadd.f32 %v833, %v840
        %v849 = vadd.f32 %v834, %v842
        %v850 = vadd.f32 %v835, %v844
        %854 = vrot.lane.b32.xlu0 %v848, 126
        %v855 = vpop.permute.xlu0 %854
        %856 = vrot.lane.b32.xlu0 %v849, 126
        %v857 = vpop.permute.xlu0 %856
        %858 = vrot.lane.b32.xlu0 %v850, 126
        %v859 = vpop.permute.xlu0 %858
        %s863 = scalar_lea.vmem %s232, 24 [#allocation7]
        %864 = vst.msk [vmem:[%s863] sm:$0xff] %vm773, %v855
        %865 = vst.msk [vmem:[%s863 + $0x8] sm:$0xff] %vm773, %v857
        %866 = vst.msk [vmem:[%s863 + $0x10] sm:$0xff] %vm773, %v859
        %vm867 = vcmp.eq.f32.partialorder %v561, %v667
        %vm868 = vcmp.eq.f32.partialorder %v562, %v668
        %vm869 = vcmp.eq.f32.partialorder %v563, %v669
        %vm870 = vcmp.eq.f32.partialorder %v564, %v670
        %v871 = vsel %vm867, %v680, 0.0
        %v872 = vsel %vm868, %v682, 0.0
        %v873 = vsel %vm869, %v684, 0.0
        %v874 = vsel %vm870, %v686, 0.0
        %v879 = vrot.slane %v871, 1
        %v880 = vrot.slane %v872, 1
        %v881 = vsel %vm314, %v879, %v880
        %v882 = vrot.slane %v873, 1
        %v883 = vsel %vm314, %v880, %v882
        %v884 = vrot.slane %v874, 1
        %v885 = vsel %vm314, %v882, %v884
        %v890 = vadd.f32 %v871, %v881
        %v891 = vadd.f32 %v872, %v883
        %v892 = vadd.f32 %v873, %v885
        %v893 = vadd.f32 %v874, %v884
        %v898 = vrot.slane %v890, 2
        %v899 = vrot.slane %v891, 2
        %v900 = vsel %vm334, %v898, %v899
        %v901 = vrot.slane %v892, 2
        %v902 = vsel %vm334, %v899, %v901
        %v903 = vrot.slane %v893, 2
        %v904 = vsel %vm334, %v901, %v903
        %v908 = vadd.f32 %v890, %v900
        %v909 = vadd.f32 %v891, %v902
        %v910 = vadd.f32 %v892, %v904
        %914 = vrot.lane.b32.xlu0 %v908, 127
        %v915 = vpop.permute.xlu0 %914
        %916 = vrot.lane.b32.xlu0 %v909, 127
        %v917 = vpop.permute.xlu0 %916
        %918 = vrot.lane.b32.xlu0 %v910, 127
        %v919 = vpop.permute.xlu0 %918
        %v923 = vadd.f32 %v908, %v915
        %v924 = vadd.f32 %v909, %v917
        %v925 = vadd.f32 %v910, %v919
        %929 = vrot.lane.b32.xlu0 %v923, 126
        %v930 = vpop.permute.xlu0 %929
        %931 = vrot.lane.b32.xlu0 %v924, 126
        %v932 = vpop.permute.xlu0 %931
        %933 = vrot.lane.b32.xlu0 %v925, 126
        %v934 = vpop.permute.xlu0 %933
        %v938 = vadd.f32 %v923, %v930
        %v939 = vadd.f32 %v924, %v932
        %v940 = vadd.f32 %v925, %v934
        %944 = vrot.lane.b32.xlu0 %v938, 126
        %v945 = vpop.permute.xlu0 %944
        %946 = vrot.lane.b32.xlu0 %v939, 126
        %v947 = vpop.permute.xlu0 %946
        %948 = vrot.lane.b32.xlu0 %v940, 126
        %v949 = vpop.permute.xlu0 %948
        %s953 = scalar_lea.vmem %s232, 48 [#allocation7]
        %954 = vst.msk [vmem:[%s953] sm:$0xff] %vm773, %v945
        %955 = vst.msk [vmem:[%s953 + $0x8] sm:$0xff] %vm773, %v947
        %956 = vst.msk [vmem:[%s953 + $0x10] sm:$0xff] %vm773, %v949
        %vm957 = vcmp.eq.f32.partialorder %v569, %v667
        %vm958 = vcmp.eq.f32.partialorder %v570, %v668
        %vm959 = vcmp.eq.f32.partialorder %v571, %v669
        %vm960 = vcmp.eq.f32.partialorder %v572, %v670
        %v961 = vsel %vm957, %v680, 0.0
        %v962 = vsel %vm958, %v682, 0.0
        %v963 = vsel %vm959, %v684, 0.0
        %v964 = vsel %vm960, %v686, 0.0
        %v969 = vrot.slane %v961, 1
        %v970 = vrot.slane %v962, 1
        %v971 = vsel %vm314, %v969, %v970
        %v972 = vrot.slane %v963, 1
        %v973 = vsel %vm314, %v970, %v972
        %v974 = vrot.slane %v964, 1
        %v975 = vsel %vm314, %v972, %v974
        %v980 = vadd.f32 %v961, %v971
        %v981 = vadd.f32 %v962, %v973
        %v982 = vadd.f32 %v963, %v975
        %v983 = vadd.f32 %v964, %v974
        %v988 = vrot.slane %v980, 2
        %v989 = vrot.slane %v981, 2
        %v990 = vsel %vm334, %v988, %v989
        %v991 = vrot.slane %v982, 2
        %v992 = vsel %vm334, %v989, %v991
        %v993 = vrot.slane %v983, 2
        %v994 = vsel %vm334, %v991, %v993
        %v998 = vadd.f32 %v980, %v990
        %v999 = vadd.f32 %v981, %v992
        %v1000 = vadd.f32 %v982, %v994
        %1004 = vrot.lane.b32.xlu0 %v998, 127
        %v1005 = vpop.permute.xlu0 %1004
        %1006 = vrot.lane.b32.xlu0 %v999, 127
        %v1007 = vpop.permute.xlu0 %1006
        %1008 = vrot.lane.b32.xlu0 %v1000, 127
        %v1009 = vpop.permute.xlu0 %1008
        %v1013 = vadd.f32 %v998, %v1005
        %v1014 = vadd.f32 %v999, %v1007
        %v1015 = vadd.f32 %v1000, %v1009
        %1019 = vrot.lane.b32.xlu0 %v1013, 126
        %v1020 = vpop.permute.xlu0 %1019
        %1021 = vrot.lane.b32.xlu0 %v1014, 126
        %v1022 = vpop.permute.xlu0 %1021
        %1023 = vrot.lane.b32.xlu0 %v1015, 126
        %v1024 = vpop.permute.xlu0 %1023
        %v1028 = vadd.f32 %v1013, %v1020
        %v1029 = vadd.f32 %v1014, %v1022
        %v1030 = vadd.f32 %v1015, %v1024
        %1034 = vrot.lane.b32.xlu0 %v1028, 126
        %v1035 = vpop.permute.xlu0 %1034
        %1036 = vrot.lane.b32.xlu0 %v1029, 126
        %v1037 = vpop.permute.xlu0 %1036
        %1038 = vrot.lane.b32.xlu0 %v1030, 126
        %v1039 = vpop.permute.xlu0 %1038
        %s1043 = scalar_lea.vmem %s232, 72 [#allocation7]
        %1044 = vst.msk [vmem:[%s1043] sm:$0xff] %vm773, %v1035
        %1045 = vst.msk [vmem:[%s1043 + $0x8] sm:$0xff] %vm773, %v1037
        %1046 = vst.msk [vmem:[%s1043 + $0x10] sm:$0xff] %vm773, %v1039
        %vm1047 = vcmp.eq.f32.partialorder %v600, %v667
        %vm1048 = vcmp.eq.f32.partialorder %v601, %v668
        %vm1049 = vcmp.eq.f32.partialorder %v602, %v669
        %vm1050 = vcmp.eq.f32.partialorder %v603, %v670
        %v1051 = vsel %vm1047, %v680, 0.0
        %v1052 = vsel %vm1048, %v682, 0.0
        %v1053 = vsel %vm1049, %v684, 0.0
        %v1054 = vsel %vm1050, %v686, 0.0
        %v1059 = vrot.slane %v1051, 1
        %v1060 = vrot.slane %v1052, 1
        %v1061 = vsel %vm314, %v1059, %v1060
        %v1062 = vrot.slane %v1053, 1
        %v1063 = vsel %vm314, %v1060, %v1062
        %v1064 = vrot.slane %v1054, 1
        %v1065 = vsel %vm314, %v1062, %v1064
        %v1070 = vadd.f32 %v1051, %v1061
        %v1071 = vadd.f32 %v1052, %v1063
        %v1072 = vadd.f32 %v1053, %v1065
        %v1073 = vadd.f32 %v1054, %v1064
        %v1078 = vrot.slane %v1070, 2
        %v1079 = vrot.slane %v1071, 2
        %v1080 = vsel %vm334, %v1078, %v1079
        %v1081 = vrot.slane %v1072, 2
        %v1082 = vsel %vm334, %v1079, %v1081
        %v1083 = vrot.slane %v1073, 2
        %v1084 = vsel %vm334, %v1081, %v1083
        %v1088 = vadd.f32 %v1070, %v1080
        %v1089 = vadd.f32 %v1071, %v1082
        %v1090 = vadd.f32 %v1072, %v1084
        %1094 = vrot.lane.b32.xlu0 %v1088, 127
        %v1095 = vpop.permute.xlu0 %1094
        %1096 = vrot.lane.b32.xlu0 %v1089, 127
        %v1097 = vpop.permute.xlu0 %1096
        %1098 = vrot.lane.b32.xlu0 %v1090, 127
        %v1099 = vpop.permute.xlu0 %1098
        %v1103 = vadd.f32 %v1088, %v1095
        %v1104 = vadd.f32 %v1089, %v1097
        %v1105 = vadd.f32 %v1090, %v1099
        %1109 = vrot.lane.b32.xlu0 %v1103, 126
        %v1110 = vpop.permute.xlu0 %1109
        %1111 = vrot.lane.b32.xlu0 %v1104, 126
        %v1112 = vpop.permute.xlu0 %1111
        %1113 = vrot.lane.b32.xlu0 %v1105, 126
        %v1114 = vpop.permute.xlu0 %1113
        %v1118 = vadd.f32 %v1103, %v1110
        %v1119 = vadd.f32 %v1104, %v1112
        %v1120 = vadd.f32 %v1105, %v1114
        %1124 = vrot.lane.b32.xlu0 %v1118, 126
        %v1125 = vpop.permute.xlu0 %1124
        %1126 = vrot.lane.b32.xlu0 %v1119, 126
        %v1127 = vpop.permute.xlu0 %1126
        %1128 = vrot.lane.b32.xlu0 %v1120, 126
        %v1129 = vpop.permute.xlu0 %1128
        %s1133 = scalar_lea.vmem %s232, 96 [#allocation7]
        %1134 = vst.msk [vmem:[%s1133] sm:$0xff] %vm773, %v1125
        %1135 = vst.msk [vmem:[%s1133 + $0x8] sm:$0xff] %vm773, %v1127
        %1136 = vst.msk [vmem:[%s1133 + $0x10] sm:$0xff] %vm773, %v1129
        %vm1137 = vcmp.eq.f32.partialorder %v631, %v667
        %vm1138 = vcmp.eq.f32.partialorder %v632, %v668
        %vm1139 = vcmp.eq.f32.partialorder %v633, %v669
        %vm1140 = vcmp.eq.f32.partialorder %v634, %v670
        %v1141 = vsel %vm1137, %v680, 0.0
        %v1142 = vsel %vm1138, %v682, 0.0
        %v1143 = vsel %vm1139, %v684, 0.0
        %v1144 = vsel %vm1140, %v686, 0.0
        %v1149 = vrot.slane %v1141, 1
        %v1150 = vrot.slane %v1142, 1
        %v1151 = vsel %vm314, %v1149, %v1150
        %v1152 = vrot.slane %v1143, 1
        %v1153 = vsel %vm314, %v1150, %v1152
        %v1154 = vrot.slane %v1144, 1
        %v1155 = vsel %vm314, %v1152, %v1154
        %v1160 = vadd.f32 %v1141, %v1151
        %v1161 = vadd.f32 %v1142, %v1153
        %v1162 = vadd.f32 %v1143, %v1155
        %v1163 = vadd.f32 %v1144, %v1154
        %v1168 = vrot.slane %v1160, 2
        %v1169 = vrot.slane %v1161, 2
        %v1170 = vsel %vm334, %v1168, %v1169
        %v1171 = vrot.slane %v1162, 2
        %v1172 = vsel %vm334, %v1169, %v1171
        %v1173 = vrot.slane %v1163, 2
        %v1174 = vsel %vm334, %v1171, %v1173
        %v1178 = vadd.f32 %v1160, %v1170
        %v1179 = vadd.f32 %v1161, %v1172
        %v1180 = vadd.f32 %v1162, %v1174
        %1184 = vrot.lane.b32.xlu0 %v1178, 127
        %v1185 = vpop.permute.xlu0 %1184
        %1186 = vrot.lane.b32.xlu0 %v1179, 127
        %v1187 = vpop.permute.xlu0 %1186
        %1188 = vrot.lane.b32.xlu0 %v1180, 127
        %v1189 = vpop.permute.xlu0 %1188
        %v1193 = vadd.f32 %v1178, %v1185
        %v1194 = vadd.f32 %v1179, %v1187
        %v1195 = vadd.f32 %v1180, %v1189
        %1199 = vrot.lane.b32.xlu0 %v1193, 126
        %v1200 = vpop.permute.xlu0 %1199
        %1201 = vrot.lane.b32.xlu0 %v1194, 126
        %v1202 = vpop.permute.xlu0 %1201
        %1203 = vrot.lane.b32.xlu0 %v1195, 126
        %v1204 = vpop.permute.xlu0 %1203
        %v1208 = vadd.f32 %v1193, %v1200
        %v1209 = vadd.f32 %v1194, %v1202
        %v1210 = vadd.f32 %v1195, %v1204
        %1214 = vrot.lane.b32.xlu0 %v1208, 126
        %v1215 = vpop.permute.xlu0 %1214
        %1216 = vrot.lane.b32.xlu0 %v1209, 126
        %v1217 = vpop.permute.xlu0 %1216
        %1218 = vrot.lane.b32.xlu0 %v1210, 126
        %v1219 = vpop.permute.xlu0 %1218
        %s1223 = scalar_lea.vmem %s232, 120 [#allocation7]
        %1224 = vst.msk [vmem:[%s1223] sm:$0xff] %vm773, %v1215
        %1225 = vst.msk [vmem:[%s1223 + $0x8] sm:$0xff] %vm773, %v1217
        %1226 = vst.msk [vmem:[%s1223 + $0x10] sm:$0xff] %vm773, %v1219
        %vm1227 = vcmp.eq.f32.partialorder %v635, %v667
        %vm1228 = vcmp.eq.f32.partialorder %v636, %v668
        %vm1229 = vcmp.eq.f32.partialorder %v637, %v669
        %vm1230 = vcmp.eq.f32.partialorder %v638, %v670
        %v1231 = vsel %vm1227, %v680, 0.0
        %v1232 = vsel %vm1228, %v682, 0.0
        %v1233 = vsel %vm1229, %v684, 0.0
        %v1234 = vsel %vm1230, %v686, 0.0
        %v1239 = vrot.slane %v1231, 1
        %v1240 = vrot.slane %v1232, 1
        %v1241 = vsel %vm314, %v1239, %v1240
        %v1242 = vrot.slane %v1233, 1
        %v1243 = vsel %vm314, %v1240, %v1242
        %v1244 = vrot.slane %v1234, 1
        %v1245 = vsel %vm314, %v1242, %v1244
        %v1250 = vadd.f32 %v1231, %v1241
        %v1251 = vadd.f32 %v1232, %v1243
        %v1252 = vadd.f32 %v1233, %v1245
        %v1253 = vadd.f32 %v1234, %v1244
        %v1258 = vrot.slane %v1250, 2
        %v1259 = vrot.slane %v1251, 2
        %v1260 = vsel %vm334, %v1258, %v1259
        %v1261 = vrot.slane %v1252, 2
        %v1262 = vsel %vm334, %v1259, %v1261
        %v1263 = vrot.slane %v1253, 2
        %v1264 = vsel %vm334, %v1261, %v1263
        %v1268 = vadd.f32 %v1250, %v1260
        %v1269 = vadd.f32 %v1251, %v1262
        %v1270 = vadd.f32 %v1252, %v1264
        %1274 = vrot.lane.b32.xlu0 %v1268, 127
        %v1275 = vpop.permute.xlu0 %1274
        %1276 = vrot.lane.b32.xlu0 %v1269, 127
        %v1277 = vpop.permute.xlu0 %1276
        %1278 = vrot.lane.b32.xlu0 %v1270, 127
        %v1279 = vpop.permute.xlu0 %1278
        %v1283 = vadd.f32 %v1268, %v1275
        %v1284 = vadd.f32 %v1269, %v1277
        %v1285 = vadd.f32 %v1270, %v1279
        %1289 = vrot.lane.b32.xlu0 %v1283, 126
        %v1290 = vpop.permute.xlu0 %1289
        %1291 = vrot.lane.b32.xlu0 %v1284, 126
        %v1292 = vpop.permute.xlu0 %1291
        %1293 = vrot.lane.b32.xlu0 %v1285, 126
        %v1294 = vpop.permute.xlu0 %1293
        %v1298 = vadd.f32 %v1283, %v1290
        %v1299 = vadd.f32 %v1284, %v1292
        %v1300 = vadd.f32 %v1285, %v1294
        %1304 = vrot.lane.b32.xlu0 %v1298, 126
        %v1305 = vpop.permute.xlu0 %1304
        %1306 = vrot.lane.b32.xlu0 %v1299, 126
        %v1307 = vpop.permute.xlu0 %1306
        %1308 = vrot.lane.b32.xlu0 %v1300, 126
        %v1309 = vpop.permute.xlu0 %1308
        %s1313 = scalar_lea.vmem %s232, 144 [#allocation7]
        %1314 = vst.msk [vmem:[%s1313] sm:$0xff] %vm773, %v1305
        %1315 = vst.msk [vmem:[%s1313 + $0x8] sm:$0xff] %vm773, %v1307
        %1316 = vst.msk [vmem:[%s1313 + $0x10] sm:$0xff] %vm773, %v1309
        %vm1317 = vcmp.eq.f32.partialorder %v639, %v667
        %vm1318 = vcmp.eq.f32.partialorder %v640, %v668
        %vm1319 = vcmp.eq.f32.partialorder %v641, %v669
        %vm1320 = vcmp.eq.f32.partialorder %v642, %v670
        %v1321 = vsel %vm1317, %v680, 0.0
        %v1322 = vsel %vm1318, %v682, 0.0
        %v1323 = vsel %vm1319, %v684, 0.0
        %v1324 = vsel %vm1320, %v686, 0.0
        %v1329 = vrot.slane %v1321, 1
        %v1330 = vrot.slane %v1322, 1
        %v1331 = vsel %vm314, %v1329, %v1330
        %v1332 = vrot.slane %v1323, 1
        %v1333 = vsel %vm314, %v1330, %v1332
        %v1334 = vrot.slane %v1324, 1
        %v1335 = vsel %vm314, %v1332, %v1334
        %v1340 = vadd.f32 %v1321, %v1331
        %v1341 = vadd.f32 %v1322, %v1333
        %v1342 = vadd.f32 %v1323, %v1335
        %v1343 = vadd.f32 %v1324, %v1334
        %v1348 = vrot.slane %v1340, 2
        %v1349 = vrot.slane %v1341, 2
        %v1350 = vsel %vm334, %v1348, %v1349
        %v1351 = vrot.slane %v1342, 2
        %v1352 = vsel %vm334, %v1349, %v1351
        %v1353 = vrot.slane %v1343, 2
        %v1354 = vsel %vm334, %v1351, %v1353
        %v1358 = vadd.f32 %v1340, %v1350
        %v1359 = vadd.f32 %v1341, %v1352
        %v1360 = vadd.f32 %v1342, %v1354
        %1364 = vrot.lane.b32.xlu0 %v1358, 127
        %v1365 = vpop.permute.xlu0 %1364
        %1366 = vrot.lane.b32.xlu0 %v1359, 127
        %v1367 = vpop.permute.xlu0 %1366
        %1368 = vrot.lane.b32.xlu0 %v1360, 127
        %v1369 = vpop.permute.xlu0 %1368
        %v1373 = vadd.f32 %v1358, %v1365
        %v1374 = vadd.f32 %v1359, %v1367
        %v1375 = vadd.f32 %v1360, %v1369
        %1379 = vrot.lane.b32.xlu0 %v1373, 126
        %v1380 = vpop.permute.xlu0 %1379
        %1381 = vrot.lane.b32.xlu0 %v1374, 126
        %v1382 = vpop.permute.xlu0 %1381
        %1383 = vrot.lane.b32.xlu0 %v1375, 126
        %v1384 = vpop.permute.xlu0 %1383
        %v1388 = vadd.f32 %v1373, %v1380
        %v1389 = vadd.f32 %v1374, %v1382
        %v1390 = vadd.f32 %v1375, %v1384
        %1394 = vrot.lane.b32.xlu0 %v1388, 126
        %v1395 = vpop.permute.xlu0 %1394
        %1396 = vrot.lane.b32.xlu0 %v1389, 126
        %v1397 = vpop.permute.xlu0 %1396
        %1398 = vrot.lane.b32.xlu0 %v1390, 126
        %v1399 = vpop.permute.xlu0 %1398
        %s1403 = scalar_lea.vmem %s232, 168 [#allocation7]
        %1404 = vst.msk [vmem:[%s1403] sm:$0xff] %vm773, %v1395
        %1405 = vst.msk [vmem:[%s1403 + $0x8] sm:$0xff] %vm773, %v1397
        %1406 = vst.msk [vmem:[%s1403 + $0x10] sm:$0xff] %vm773, %v1399
        %s1407 = sand.u32 %s104, 1
        %s1408 = scalar_lea.sflag [#allocation4], %s1407
        %s1409 = sand.u32 %s104, 1
        %s1410 = smul.addr %s1409, 192
        %s1411 = scalar_lea.vmem [#allocation7], %s1410
        // Predicated region
        $region37: #{tpu_custom_call.1} parent=27 // pred_check
          %p1412 = pneg %p114
        $region38: #{tpu_custom_call.1} parent=27 // pred_check_branch
          %1414 = sbr.rel (%p1412) target = $region40
        $region39: #{tpu_custom_call.1} parent=27 // pred_region
          %s1415 = smul.u32 3, %s27
          %s1417 = ssub.s32 3072, 3072
          %1418 = vsyncadd %s1408, %s1417
          %s1419 = smul.addr %s26, 24
          %s1420 = sadd.s32 %s1415, %s1419
          %s1421 = smul.addr %s1420, 128
          %s1422 = scalar_lea.hbm %s2, %s1421
          %s1423 = sshll.u32 %s1411, 4
          %s1424 = int_to_ptr.vmem [resolvable:$true] %s1423
          %1429 = dma.vmem_to_hbm [thread:$0]  %s1424, 3072, %s1422, %s1408, 128, 128, 8
        $region40: #{tpu_custom_call.1} parent=27 // pred_fallthru
          _
      $region28: #{tpu_custom_call.1} parent=5 // pred_fallthru
        _
      %p1430 = scmp.le.s32.totalorder 2, %s17
      // Predicated region
      $region41: #{tpu_custom_call.1} parent=5 // pred_check
        %p1431 = pneg %p1430
      $region42: #{tpu_custom_call.1} parent=5 // pred_check_branch
        %1433 = sbr.rel (%p1431) target = $region44
      $region43: #{tpu_custom_call.1} parent=5 // pred_region
        %s1434 = ssub.s32 %s17, 2
        // Predicated region
        $region45: #{tpu_custom_call.1} parent=43 // pred_check
          %p1435 = pneg %p120
        $region46: #{tpu_custom_call.1} parent=43 // pred_check_branch
          %1437 = sbr.rel (%p1435) target = $region48
        $region47: #{tpu_custom_call.1} parent=43 // pred_region
          %s1438 = sand.u32 %s105, 1
          %s1439 = scalar_lea.sflag [#allocation4], %s1438
          %s1440 = sand.u32 %s105, 1
          %s1441 = smul.addr %s1440, 192
          %s1442 = scalar_lea.vmem [#allocation7], %s1441
          %1443 = dma.done %s1439, 3072
        $region48: #{tpu_custom_call.1} parent=43 // pred_fallthru
          _
      $region44: #{tpu_custom_call.1} parent=5 // pred_fallthru
        _
    $region6: #{tpu_custom_call.1} parent=1 // loop_footer
      %s21 = sadd.s32 1, %s17
    $region7: #{tpu_custom_call.1} parent=1 // loop_footer_branch
      %16 = sbr.rel target = $region3
    $region8: #{tpu_custom_call.1} parent=1 // loop_exit
      _
    %1444 = vsyncpa [#allocation3], 1
    %s1445 = scalar_lea.sflag [#allocation3], 1
    %1446 = vsyncpa %s1445, 1
    %1447 = vsyncpa [#allocation6], 1
    %s1448 = scalar_lea.sflag [#allocation6], 1
    %1449 = vsyncpa %s1448, 1
    %1450 = vsyncpa [#allocation4], 1
    %s1451 = scalar_lea.sflag [#allocation4], 1
    %1452 = vsyncpa %s1451, 1

</llo_original>
